<compile_context>
chip_gen: v7x
topology: tpu7x:2x2x1
jax: 0.10.0
libtpu: 0.0.40
codegen_flags: <defaults>
</compile_context>

<pallas_src>
import jax
import jax.numpy as jnp
from jax import lax
from jax.experimental import pallas as pl
from jax.experimental.pallas import tpu as pltpu


def mlp_attn_pool_kernel(vlen_ref, key_ref, w1_ref, w2_ref, out_ref):
    # vlen_ref : VMEM (B, 1) int32      (full array, resident across steps)
    # key_ref  : VMEM (TB, S, D)        score_dtype (f32 or bf16)
    # w1_ref   : VMEM (D, U)            score_dtype (resident)
    # w2_ref   : VMEM (1, U) float32    (resident)
    # out_ref  : VMEM (TB, D)           key dtype
    TB, S, D = key_ref.shape
    i = pl.program_id(0)

    key = key_ref[...]                                           # (TB, S, D)

    # --- score head: one (TB*S, D) @ (D, U) MXU matmul, f32 accumulate -----
    # S is padded to a multiple of 8 by the wrapper, so this flatten is
    # sublane-aligned (no relayout copy).
    h = jnp.tanh(
        jnp.dot(key.reshape(TB * S, D), w1_ref[...],
                preferred_element_type=jnp.float32))             # (TB*S, U)

    # W2 projection (N=1): VPU broadcast-mul + lane reduce, then a single
    # sublane->lane repack to lane-major (TB, S) scores.
    s = jnp.sum(h * w2_ref[...], axis=-1, keepdims=True).reshape(TB, S)

    # --- masked softmax along the lane-major sequence axis (unnormalized) --
    start = i * TB
    if TB % 8 == 0:
        start = pl.multiple_of(start, 8)
    vlen = vlen_ref[pl.ds(start, TB), :]                         # (TB, 1)
    pos = lax.broadcasted_iota(jnp.int32, (TB, S), 1)            # (TB, S)
    s = jnp.where(pos < vlen, s, -jnp.inf)
    m = jnp.max(s, axis=-1, keepdims=True)                       # (TB, 1)
    p = jnp.exp(s - m)                                           # (TB, S)
    denom = jnp.sum(p, axis=-1, keepdims=True)                   # (TB, 1)

    # --- pooling: MXU batched dot over TB with the unnormalized weights ----
    # (avoids a (TB, S, D) f32 intermediate and the w->sublane re-broadcast)
    pooled = jnp.einsum(
        "bqs,bsd->bqd", p.astype(key.dtype)[:, None, :], key,
        preferred_element_type=jnp.float32)[:, 0, :]             # (TB, D) f32

    # Exact normalization: one f32 divide per batch row, then a VPU scale.
    out_ref[...] = (pooled * (1.0 / denom)).astype(out_ref.dtype)


def _choose_batch_tile(B, S, D, itemsize, block_budget_bytes, min_grid_steps):
    """Pick TB = batch rows per grid step.

    Only tiles that are a multiple of 8 or the whole batch are valid (the
    output block's second-to-last dim must be a multiple of 8 or the full
    dim).  Prefer the largest valid tile that fits the byte budget and
    leaves at least `min_grid_steps` steps; never exceed the budget unless
    no valid tile fits (then take the smallest valid tile).
    """
    bytes_per_row = max(1, S * D * itemsize)
    max_tb = max(1, block_budget_bytes // bytes_per_row)
    valid = sorted({d for d in range(8, B + 1, 8) if B % d == 0} | {B})
    fitting = [tb for tb in valid if tb <= max_tb]
    preferred = [tb for tb in fitting if (B // tb) >= min_grid_steps]
    if preferred:
        return preferred[-1]
    if fitting:
        return fitting[-1]
    return valid[0]


def mlp_attention_pool(key, valid_len, w1, w2, *,
                       score_dtype=None,
                       batch_tile=None,
                       block_budget_bytes=6 * 1024 * 1024,
                       min_grid_steps=1,
                       vmem_limit_bytes=48 * 1024 * 1024):
    """MLPAttentionPool forward.

    key: (B, S, D); valid_len: (B,) int; w1: (D, U); w2: (U, 1).
    Returns (B, D) in key.dtype.

    score_dtype: dtype of the MXU operands (score matmul + pooling).
      Defaults to key.dtype -- pass a bf16 key for bf16 MXU compute with f32
      accumulation.  f32 keys give an exact (f32) forward.
    min_grid_steps: set >= 2 when targeting v7x so both TensorCores get work;
      leave at 1 on single-TC v5e/v6e.
    """
    B, S, D = key.shape
    U = w1.shape[1]
    assert valid_len.shape == (B,)
    assert w1.shape == (D, U) and w2.shape == (U, 1)
    out_dtype = key.dtype
    if score_dtype is None:
        score_dtype = key.dtype

    # Pad S to a multiple of 8 so the in-kernel flatten is sublane-aligned.
    # Padded positions have pos >= valid_len, so they are masked out and the
    # zero-padded key rows contribute nothing to the pooled output.
    s_pad = ((S + 7) // 8) * 8
    if s_pad != S:
        key = jnp.pad(key, ((0, 0), (0, s_pad - S), (0, 0)))
    key = key.astype(score_dtype)

    tb = batch_tile if batch_tile is not None else _choose_batch_tile(
        B, s_pad, D, jnp.dtype(score_dtype).itemsize,
        block_budget_bytes, min_grid_steps)
    assert B % tb == 0, (B, tb)

    vlen2d = valid_len.astype(jnp.int32).reshape(B, 1)
    w1c = w1.astype(score_dtype)
    w2row = w2.astype(jnp.float32).reshape(1, U)

    return pl.pallas_call(
        mlp_attn_pool_kernel,
        out_shape=jax.ShapeDtypeStruct((B, D), out_dtype),
        grid=(B // tb,),
        in_specs=[
            pl.BlockSpec((B, 1), lambda i: (0, 0)),              # valid_len (resident)
            pl.BlockSpec((tb, s_pad, D), lambda i: (i, 0, 0)),   # key tile
            pl.BlockSpec((D, U), lambda i: (0, 0)),              # w1 (resident)
            pl.BlockSpec((1, U), lambda i: (0, 0)),              # w2 row (resident)
        ],
        out_specs=pl.BlockSpec((tb, D), lambda i: (i, 0)),
        compiler_params=pltpu.CompilerParams(
            dimension_semantics=("parallel",),
            vmem_limit_bytes=vmem_limit_bytes),
    )(vlen2d, key, w1c, w2row)


def reference(key, valid_len, w1, w2):
    # Pure-JAX mirror of the PyTorch forward, for the correctness check.
    scores = jnp.squeeze(jnp.tanh(key @ w1) @ w2, -1)            # (B, S)
    mask = jnp.arange(key.shape[1])[None, :] < valid_len[:, None]
    scores = jnp.where(mask, scores, -jnp.inf)
    w = jax.nn.softmax(scores, axis=-1)
    return jnp.sum(w[..., None] * key, axis=1)


if __name__ == "__main__":
    B, S, D, U = 16, 8, 32, 16   # batch=16, seq=8, key_size=32, units=16

    k0 = jax.random.PRNGKey(0)
    k1, k2, k3 = jax.random.split(k0, 3)

    key = jax.random.normal(k1, (B, S, D), dtype=jnp.float32)
    # nn.Linear(key_size, units, bias=False).weight is (units, key_size);
    # we keep the transposed (key_size, units) form for row-major matmul.
    w1 = jax.random.normal(k2, (D, U), dtype=jnp.float32) / jnp.sqrt(D)
    w2 = jax.random.normal(k3, (U, 1), dtype=jnp.float32) / jnp.sqrt(U)
    # valid lengths in [1, S] (valid_len == 0 would be NaN, as in PyTorch)
    valid_len = (jnp.arange(B, dtype=jnp.int32) % S) + 1

    # --- exact f32 path (matches the PyTorch module's f32 forward) ---------
    out = jax.block_until_ready(mlp_attention_pool(key, valid_len, w1, w2))
    ref = reference(key, valid_len, w1, w2)
    assert out.shape == (B, D)
    assert jnp.allclose(out, ref, atol=1e-3, rtol=1e-3), (
        float(jnp.max(jnp.abs(out - ref))))

    # --- bf16 MXU path (key supplied in bf16; f32 accumulation) ------------
    # Compared against a reference that uses the same bf16-rounded inputs;
    # the remaining delta is bf16 pooling weights + bf16 output storage.
    key_bf16 = key.astype(jnp.bfloat16)
    out_bf = jax.block_until_ready(
        mlp_attention_pool(key_bf16, valid_len, w1, w2))
    ref_bf = reference(key_bf16.astype(jnp.float32), valid_len,
                       w1.astype(jnp.bfloat16).astype(jnp.float32), w2)
    assert out_bf.shape == (B, D) and out_bf.dtype == jnp.bfloat16
    assert jnp.allclose(out_bf.astype(jnp.float32), ref_bf,
                        atol=5e-2, rtol=5e-2), (
        float(jnp.max(jnp.abs(out_bf.astype(jnp.float32) - ref_bf))))

    print("KERNEL_OK")
</pallas_src>

<mosaic_0001>
module attributes {stable_mosaic.version = 11 : i64} {
  func.func @mlp_attn_pool_kernel(%arg0: i32, %arg1: memref<16x1xi32, #tpu.memory_space<vmem>>, %arg2: memref<16x8x32xf32, #tpu.memory_space<vmem>>, %arg3: memref<32x16xf32, #tpu.memory_space<vmem>>, %arg4: memref<1x16xf32, #tpu.memory_space<vmem>>, %arg5: memref<16x32xf32, #tpu.memory_space<vmem>>) attributes {dimension_semantics = [#tpu.dimension_semantics<parallel>], iteration_bounds = array<i64: 1>, scalar_prefetch = 0 : i64, scratch_operands = 0 : i64, tpu.core_type = #tpu.core_type<tc>, window_params = [{pipeline_mode = #tpu.pipeline_mode<synchronous>, transform_indices = @transform_0, window_bounds = array<i64: 16, 1>}, {transform_indices = @transform_1, window_bounds = array<i64: 16, 8, 32>}, {pipeline_mode = #tpu.pipeline_mode<synchronous>, transform_indices = @transform_2, window_bounds = array<i64: 32, 16>}, {pipeline_mode = #tpu.pipeline_mode<synchronous>, transform_indices = @transform_3, window_bounds = array<i64: 1, 16>}, {transform_indices = @transform_4, window_bounds = array<i64: 16, 32>}]} {
    %c0 = arith.constant 0 : index
    %c0_0 = arith.constant 0 : index
    %c0_1 = arith.constant 0 : index
    %0 = vector.load %arg2[%c0, %c0_0, %c0_1] : memref<16x8x32xf32, #tpu.memory_space<vmem>>, vector<16x8x32xf32>
    %1 = vector.shape_cast %0 : vector<16x8x32xf32> to vector<128x32xf32>
    %c0_2 = arith.constant 0 : index
    %c0_3 = arith.constant 0 : index
    %2 = vector.load %arg3[%c0_2, %c0_3] : memref<32x16xf32, #tpu.memory_space<vmem>>, vector<32x16xf32>
    %cst = arith.constant dense<0.000000e+00> : vector<128x16xf32>
    %3 = tpu.matmul %1, %2, %cst {dimension_numbers = #tpu.dot_dimension_numbers<[1], [0], [0], [1], [0, 0, 1, 1], [], []>} : vector<128x32xf32>, vector<32x16xf32>, vector<128x16xf32> -> vector<128x16xf32>
    %4 = math.tanh %3 : vector<128x16xf32>
    %c0_4 = arith.constant 0 : index
    %c0_5 = arith.constant 0 : index
    %5 = vector.load %arg4[%c0_4, %c0_5] : memref<1x16xf32, #tpu.memory_space<vmem>>, vector<1x16xf32>
    %6 = vector.broadcast %5 : vector<1x16xf32> to vector<128x16xf32>
    %7 = arith.mulf %4, %6 : vector<128x16xf32>
    %cst_6 = arith.constant dense<0.000000e+00> : vector<128xf32>
    %8 = vector.multi_reduction <add>, %7, %cst_6 [1] : vector<128x16xf32> to vector<128xf32>
    %9 = vector.shape_cast %8 : vector<128xf32> to vector<128x1xf32>
    %10 = vector.shape_cast %9 : vector<128x1xf32> to vector<16x8xf32>
    %c16_i32 = arith.constant 16 : i32
    %11 = arith.muli %arg0, %c16_i32 : i32
    %12 = tpu.assume_multiple %11, 8 : i32
    %13 = arith.index_cast %12 : i32 to index
    %c0_7 = arith.constant 0 : index
    %14 = vector.load %arg1[%13, %c0_7] : memref<16x1xi32, #tpu.memory_space<vmem>>, vector<16x1xi32>
    %15 = tpu.iota {dimensions = array<i32: 1>} : vector<16x8xi32>
    %16 = vector.broadcast %14 : vector<16x1xi32> to vector<16x8xi32>
    %17 = arith.cmpi slt, %15, %16 : vector<16x8xi32>
    %cst_8 = arith.constant 0xFF800000 : f32
    %18 = vector.broadcast %cst_8 : f32 to vector<16x8xf32>
    %19 = arith.select %17, %10, %18 : vector<16x8xi1>, vector<16x8xf32>
    %cst_9 = arith.constant dense<0xFF800000> : vector<16xf32>
    %20 = vector.multi_reduction <maximumf>, %19, %cst_9 [1] : vector<16x8xf32> to vector<16xf32>
    %21 = vector.shape_cast %20 : vector<16xf32> to vector<16x1xf32>
    %22 = vector.broadcast %21 : vector<16x1xf32> to vector<16x8xf32>
    %23 = arith.subf %19, %22 : vector<16x8xf32>
    %24 = math.exp %23 : vector<16x8xf32>
    %cst_10 = arith.constant dense<0.000000e+00> : vector<16xf32>
    %25 = vector.multi_reduction <add>, %24, %cst_10 [1] : vector<16x8xf32> to vector<16xf32>
    %26 = vector.shape_cast %25 : vector<16xf32> to vector<16x1xf32>
    %27 = vector.shape_cast %24 : vector<16x8xf32> to vector<16x1x8xf32>
    "tpu.trace_start"() <{level = 10 : i32, message = "bqs,bsd->bqd"}> : () -> ()
    %cst_11 = arith.constant dense<0.000000e+00> : vector<16x1x32xf32>
    %28 = tpu.matmul %27, %0, %cst_11 {dimension_numbers = #tpu.dot_dimension_numbers<[2], [1], [1], [2], [0, 0, 0, 1, 1, 2], [0], [0]>} : vector<16x1x8xf32>, vector<16x8x32xf32>, vector<16x1x32xf32> -> vector<16x1x32xf32>
    "tpu.trace_stop"() : () -> ()
    %29 = vector.shape_cast %28 : vector<16x1x32xf32> to vector<16x32xf32>
    %cst_12 = arith.constant 1.000000e+00 : f32
    %30 = vector.broadcast %cst_12 : f32 to vector<16x1xf32>
    %31 = arith.divf %30, %26 : vector<16x1xf32>
    %32 = vector.broadcast %31 : vector<16x1xf32> to vector<16x32xf32>
    %33 = arith.mulf %29, %32 : vector<16x32xf32>
    %c0_13 = arith.constant 0 : index
    %c0_14 = arith.constant 0 : index
    %34 = vector.load %arg5[%c0_13, %c0_14] : memref<16x32xf32, #tpu.memory_space<vmem>>, vector<16x32xf32>
    tpu.vector_store %arg5[%c0_13, %c0_14], %33 {strides = array<i32>} : memref<16x32xf32, #tpu.memory_space<vmem>>, vector<16x32xf32>,
    return
  }
  func.func @transform_0(%arg0: i32) -> (i32, i32) {
    %c0_i32 = arith.constant 0 : i32
    %c0_i32_0 = arith.constant 0 : i32
    %c0_i32_1 = arith.constant 0 : i32
    return %c0_i32, %c0_i32_0 : i32, i32
  }
  func.func @transform_1(%arg0: i32) -> (i32, i32, i32) {
    %c0_i32 = arith.constant 0 : i32
    %c0_i32_0 = arith.constant 0 : i32
    %c0_i32_1 = arith.constant 0 : i32
    return %arg0, %c0_i32, %c0_i32_0 : i32, i32, i32
  }
  func.func @transform_2(%arg0: i32) -> (i32, i32) {
    %c0_i32 = arith.constant 0 : i32
    %c0_i32_0 = arith.constant 0 : i32
    %c0_i32_1 = arith.constant 0 : i32
    return %c0_i32, %c0_i32_0 : i32, i32
  }
  func.func @transform_3(%arg0: i32) -> (i32, i32) {
    %c0_i32 = arith.constant 0 : i32
    %c0_i32_0 = arith.constant 0 : i32
    %c0_i32_1 = arith.constant 0 : i32
    return %c0_i32, %c0_i32_0 : i32, i32
  }
  func.func @transform_4(%arg0: i32) -> (i32, i32) {
    %c0_i32 = arith.constant 0 : i32
    %c0_i32_0 = arith.constant 0 : i32
    return %arg0, %c0_i32 : i32, i32
  }
}

</mosaic_0001>

<llo_original>
// kernel: tpu_custom_call.1
$region0: #{tpu_custom_call.1}
  #allocation0 [shape = 'u32[]', space=smem, size = 0x4, offset = 0x4, fixed_abs, tag = 'smem constant byte address 0x4 - core index']
  #allocation1 [shape = 'u32[144,128]{1,0:T(1,128)}', space=vmem, size = 0x12000, scoped, tag = 'internal scratch']
  %s0 = inlined_call_operand.vmem [shape: s32[16,1], index: 0, kind: input, shape index: {}]
  %s1 = inlined_call_operand.hbm [shape: f32[16,8,32], index: 1, kind: input, shape index: {}]
  %s2 = inlined_call_operand.vmem [shape: f32[32,16], index: 2, kind: input, shape index: {}]
  %s3 = inlined_call_operand.vmem [shape: f32[1,16], index: 3, kind: input, shape index: {}]
  %s4 = inlined_call_operand.hbm [shape: f32[16,32], index: 4, kind: output, shape index: {}]
  %s5 = sld [smem:[#allocation0]]
  $region30: #{tpu_custom_call.1} parent=0
    _
  %s7 = ssub.s32 1, %s5
  %s8 = scalar_select 0, %s7, %s5
  $region1: #{tpu_custom_call.1} parent=0
    #allocation2 [shape = 'u8[65536]{0}', space=vmem, size = 0x10000, scoped, tag = 'input window, operand 1, single buffered']
    #allocation3 [shape = 's32[1]{0}', space=sflag, size = 0x4, scoped, tag = 'scoped memory for tpu_custom_call.1']
    #allocation4 [shape = 's32[1]{0}', space=sflag, size = 0x4, scoped, tag = 'scoped memory for tpu_custom_call.1']
    #allocation5 [shape = 'u8[8192]{0}', space=vmem, size = 0x2000, scoped, tag = 'output window, operand 0, single buffered']
    %9 = vsyncpa [#allocation3], 0
    %10 = vsyncpa [#allocation4], 0
    // Predicated region
    $region2: #{tpu_custom_call.1} parent=1 // pred_check
      _
    $region3: #{tpu_custom_call.1} parent=1 // pred_check_branch
      %12 = sbr.rel (0) target = $region5
    $region4: #{tpu_custom_call.1} parent=1 // pred_region
      _
    $region5: #{tpu_custom_call.1} parent=1 // pred_fallthru
      _
    // Predicated region
    $region6: #{tpu_custom_call.1} parent=1 // pred_check
      _
    $region7: #{tpu_custom_call.1} parent=1 // pred_check_branch
      %14 = sbr.rel (0) target = $region9
    $region8: #{tpu_custom_call.1} parent=1 // pred_region
      %s16 = ssub.s32 2048, 2048
      %17 = vsyncadd [#allocation3], %s16
      %s18 = sshll.u32 [#allocation2], 4
      %s19 = int_to_ptr.vmem [resolvable:$true] %s18
      %24 = dma.hbm_to_vmem [thread:$0]  %s1, 2048, %s19, [#allocation3], 128, 128, 8
    $region9: #{tpu_custom_call.1} parent=1 // pred_fallthru
      _
    // Predicated region
    $region10: #{tpu_custom_call.1} parent=1 // pred_check
      _
    $region11: #{tpu_custom_call.1} parent=1 // pred_check_branch
      %26 = sbr.rel (0) target = $region13
    $region12: #{tpu_custom_call.1} parent=1 // pred_region
      _
    $region13: #{tpu_custom_call.1} parent=1 // pred_fallthru
      _
    // Predicated region
    $region14: #{tpu_custom_call.1} parent=1 // pred_check
      _
    $region15: #{tpu_custom_call.1} parent=1 // pred_check_branch
      %28 = sbr.rel (0) target = $region17
    $region16: #{tpu_custom_call.1} parent=1 // pred_region
      _
    $region17: #{tpu_custom_call.1} parent=1 // pred_fallthru
      _
    // Predicated region
    $region18: #{tpu_custom_call.1} parent=1 // pred_check
      _
    $region19: #{tpu_custom_call.1} parent=1 // pred_check_branch
      %30 = sbr.rel (0) target = $region21
    $region20: #{tpu_custom_call.1} parent=1 // pred_region
      %31 = dma.done [#allocation3], 2048
    $region21: #{tpu_custom_call.1} parent=1 // pred_fallthru
      _
    %v32 = vld [vmem:[#allocation2] sm:$0xff]
    %v33 = vld [vmem:[#allocation2 + $0x8] sm:$0xff]
    %v34 = vld [vmem:[#allocation2 + $0x10] sm:$0xff]
    %v35 = vld [vmem:[#allocation2 + $0x18] sm:$0xff]
    %v36 = vld [vmem:[#allocation2 + $0x20] sm:$0xff]
    %v37 = vld [vmem:[#allocation2 + $0x28] sm:$0xff]
    %v38 = vld [vmem:[#allocation2 + $0x30] sm:$0xff]
    %v39 = vld [vmem:[#allocation2 + $0x38] sm:$0xff]
    %v40 = vld [vmem:[#allocation2 + $0x40] sm:$0xff]
    %v41 = vld [vmem:[#allocation2 + $0x48] sm:$0xff]
    %v42 = vld [vmem:[#allocation2 + $0x50] sm:$0xff]
    %v43 = vld [vmem:[#allocation2 + $0x58] sm:$0xff]
    %v44 = vld [vmem:[#allocation2 + $0x60] sm:$0xff]
    %v45 = vld [vmem:[#allocation2 + $0x68] sm:$0xff]
    %v46 = vld [vmem:[#allocation2 + $0x70] sm:$0xff]
    %v47 = vld [vmem:[#allocation2 + $0x78] sm:$0xff]
    %v48 = vld [vmem:[%s2] sm:$0xff]
    %v49 = vld [vmem:[%s2 + $0x8] sm:$0xff]
    %v50 = vld [vmem:[%s2 + $0x10] sm:$0xff]
    %v51 = vld [vmem:[%s2 + $0x18] sm:$0xff]
    %vm52 = vcmask 261120
    %v54 = vsel %vm52, %v32, 0
    %v57 = vsel %vm52, %v33, 0
    %v60 = vsel %vm52, %v34, 0
    %v63 = vsel %vm52, %v35, 0
    %v66 = vsel %vm52, %v36, 0
    %v69 = vsel %vm52, %v37, 0
    %v72 = vsel %vm52, %v38, 0
    %v75 = vsel %vm52, %v39, 0
    %v78 = vsel %vm52, %v40, 0
    %v81 = vsel %vm52, %v41, 0
    %v84 = vsel %vm52, %v42, 0
    %v87 = vsel %vm52, %v43, 0
    %v90 = vsel %vm52, %v44, 0
    %v93 = vsel %vm52, %v45, 0
    %v96 = vsel %vm52, %v46, 0
    %v99 = vsel %vm52, %v47, 0
    %101 = vmatprep.subr.mxu0 0.0
    %102 = vmatpush1.msra.mxu0 %v48
    %103 = vmatprep.subr.mxu0 0.0
    %104 = vmatpush1.msra.mxu0 %v49
    %105 = vmatprep.subr.mxu0 0.0
    %106 = vmatpush1.msra.mxu0 %v50
    %107 = vmatprep.subr.mxu0 0.0
    %108 = vmatpush1.msra.mxu0 %v51
    %109 = vmatprep.subr.mxu0 0.0
    %110 = vmatpush1.msra.mxu0 0.0
    %111 = vmatprep.subr.mxu0 0.0
    %112 = vmatpush1.msra.mxu0 0.0
    %113 = vmatprep.subr.mxu0 0.0
    %114 = vmatpush1.msra.mxu0 0.0
    %115 = vmatprep.subr.mxu0 0.0
    %116 = vmatpush1.msra.mxu0 0.0
    %117 = vmatprep.subr.mxu0 0.0
    %118 = vmatpush1.msra.mxu0 0.0
    %119 = vmatprep.subr.mxu0 0.0
    %120 = vmatpush1.msra.mxu0 0.0
    %121 = vmatprep.subr.mxu0 0.0
    %122 = vmatpush1.msra.mxu0 0.0
    %123 = vmatprep.subr.mxu0 0.0
    %124 = vmatpush1.msra.mxu0 0.0
    %125 = vmatprep.subr.mxu0 0.0
    %126 = vmatpush1.msra.mxu0 0.0
    %127 = vmatprep.subr.mxu0 0.0
    %128 = vmatpush1.msra.mxu0 0.0
    %129 = vmatprep.subr.mxu0 0.0
    %130 = vmatpush1.msra.mxu0 0.0
    %131 = vmatprep.subr.mxu0 0.0
    %132 = vmatpush1.msra.mxu0 0.0
    %133 = vmatprep.subr.mxu0 0.0
    %134 = vmatpush1.msra.mxu0 0.0
    %135 = vmatprep.subr.mxu0 0.0
    %136 = vmatpush1.msra.mxu0 0.0
    %137 = vmatprep.subr.mxu0 0.0
    %138 = vmatpush1.msra.mxu0 0.0
    %139 = vmatprep.subr.mxu0 0.0
    %140 = vmatpush1.msra.mxu0 0.0
    %141 = vmatprep.subr.mxu0 0.0
    %142 = vmatpush1.msra.mxu0 0.0
    %143 = vmatprep.subr.mxu0 0.0
    %144 = vmatpush1.msra.mxu0 0.0
    %145 = vmatprep.subr.mxu0 0.0
    %146 = vmatpush1.msra.mxu0 0.0
    %147 = vmatprep.subr.mxu0 0.0
    %148 = vmatpush1.msra.mxu0 0.0
    %149 = vmatprep.subr.mxu0 0.0
    %150 = vmatpush1.msra.mxu0 0.0
    %151 = vmatprep.subr.mxu0 0.0
    %152 = vmatpush1.msra.mxu0 0.0
    %153 = vmatprep.subr.mxu0 0.0
    %154 = vmatpush1.msra.mxu0 0.0
    %155 = vmatprep.subr.mxu0 0.0
    %156 = vmatpush1.msra.mxu0 0.0
    %157 = vmatprep.subr.mxu0 0.0
    %158 = vmatpush1.msra.mxu0 0.0
    %159 = vmatprep.subr.mxu0 0.0
    %160 = vmatpush1.msra.mxu0 0.0
    %161 = vmatprep.subr.mxu0 0.0
    %162 = vmatpush1.msra.mxu0 0.0
    %163 = vmatprep.subr.mxu0 0.0
    %164 = vmatpush1.msra.mxu0 0.0
    %165 = vmatprep.mubr.f32.mxu0 0.0
    %166 = vmatmul.mubr.f32.gmra.mrb[0].mxu0 %v54
    %v167 = vpop.f32.mrb[0].mxu0
    %v168 = vadd.f32 0.0, %v167
    %v169 = vpop.f32.mrb[0].mxu0
    %170 = vmatprep.mubr.f32.mxu0 0.0
    %171 = vmatmul.mubr.f32.gmra.mrb[0].mxu0 %v57
    %v172 = vpop.f32.mrb[0].mxu0
    %v173 = vadd.f32 0.0, %v172
    %v174 = vpop.f32.mrb[0].mxu0
    %175 = vmatprep.mubr.f32.mxu0 0.0
    %176 = vmatmul.mubr.f32.gmra.mrb[0].mxu0 %v60
    %v177 = vpop.f32.mrb[0].mxu0
    %v178 = vadd.f32 0.0, %v177
    %v179 = vpop.f32.mrb[0].mxu0
    %180 = vmatprep.mubr.f32.mxu0 0.0
    %181 = vmatmul.mubr.f32.gmra.mrb[0].mxu0 %v63
    %v182 = vpop.f32.mrb[0].mxu0
    %v183 = vadd.f32 0.0, %v182
    %v184 = vpop.f32.mrb[0].mxu0
    %185 = vmatprep.mubr.f32.mxu0 0.0
    %186 = vmatmul.mubr.f32.gmra.mrb[0].mxu0 %v66
    %v187 = vpop.f32.mrb[0].mxu0
    %v188 = vadd.f32 0.0, %v187
    %v189 = vpop.f32.mrb[0].mxu0
    %190 = vmatprep.mubr.f32.mxu0 0.0
    %191 = vmatmul.mubr.f32.gmra.mrb[0].mxu0 %v69
    %v192 = vpop.f32.mrb[0].mxu0
    %v193 = vadd.f32 0.0, %v192
    %v194 = vpop.f32.mrb[0].mxu0
    %195 = vmatprep.mubr.f32.mxu0 0.0
    %196 = vmatmul.mubr.f32.gmra.mrb[0].mxu0 %v72
    %v197 = vpop.f32.mrb[0].mxu0
    %v198 = vadd.f32 0.0, %v197
    %v199 = vpop.f32.mrb[0].mxu0
    %200 = vmatprep.mubr.f32.mxu0 0.0
    %201 = vmatmul.mubr.f32.gmra.mrb[0].mxu0 %v75
    %v202 = vpop.f32.mrb[0].mxu0
    %v203 = vadd.f32 0.0, %v202
    %v204 = vpop.f32.mrb[0].mxu0
    %205 = vmatprep.mubr.f32.mxu0 0.0
    %206 = vmatmul.mubr.f32.gmra.mrb[0].mxu0 %v78
    %v207 = vpop.f32.mrb[0].mxu0
    %v208 = vadd.f32 0.0, %v207
    %v209 = vpop.f32.mrb[0].mxu0
    %210 = vmatprep.mubr.f32.mxu0 0.0
    %211 = vmatmul.mubr.f32.gmra.mrb[0].mxu0 %v81
    %v212 = vpop.f32.mrb[0].mxu0
    %v213 = vadd.f32 0.0, %v212
    %v214 = vpop.f32.mrb[0].mxu0
    %215 = vmatprep.mubr.f32.mxu0 0.0
    %216 = vmatmul.mubr.f32.gmra.mrb[0].mxu0 %v84
    %v217 = vpop.f32.mrb[0].mxu0
    %v218 = vadd.f32 0.0, %v217
    %v219 = vpop.f32.mrb[0].mxu0
    %220 = vmatprep.mubr.f32.mxu0 0.0
    %221 = vmatmul.mubr.f32.gmra.mrb[0].mxu0 %v87
    %v222 = vpop.f32.mrb[0].mxu0
    %v223 = vadd.f32 0.0, %v222
    %v224 = vpop.f32.mrb[0].mxu0
    %225 = vmatprep.mubr.f32.mxu0 0.0
    %226 = vmatmul.mubr.f32.gmra.mrb[0].mxu0 %v90
    %v227 = vpop.f32.mrb[0].mxu0
    %v228 = vadd.f32 0.0, %v227
    %v229 = vpop.f32.mrb[0].mxu0
    %230 = vmatprep.mubr.f32.mxu0 0.0
    %231 = vmatmul.mubr.f32.gmra.mrb[0].mxu0 %v93
    %v232 = vpop.f32.mrb[0].mxu0
    %v233 = vadd.f32 0.0, %v232
    %v234 = vpop.f32.mrb[0].mxu0
    %235 = vmatprep.mubr.f32.mxu0 0.0
    %236 = vmatmul.mubr.f32.gmra.mrb[0].mxu0 %v96
    %v237 = vpop.f32.mrb[0].mxu0
    %v238 = vadd.f32 0.0, %v237
    %v239 = vpop.f32.mrb[0].mxu0
    %240 = vmatprep.mubr.f32.mxu0 0.0
    %241 = vmatmul.mubr.f32.gmra.mrb[0].mxu0 %v99
    %v242 = vpop.f32.mrb[0].mxu0
    %v243 = vadd.f32 0.0, %v242
    %v244 = vpop.f32.mrb[0].mxu0
    %245 = vdwg.mxu0
    %v246 = vtanh.pop %v168
    %v247 = vtanh.pop %v173
    %v248 = vtanh.pop %v178
    %v249 = vtanh.pop %v183
    %v250 = vtanh.pop %v188
    %v251 = vtanh.pop %v193
    %v252 = vtanh.pop %v198
    %v253 = vtanh.pop %v203
    %v254 = vtanh.pop %v208
    %v255 = vtanh.pop %v213
    %v256 = vtanh.pop %v218
    %v257 = vtanh.pop %v223
    %v258 = vtanh.pop %v228
    %v259 = vtanh.pop %v233
    %v260 = vtanh.pop %v238
    %v261 = vtanh.pop %v243
    %v262 = vld [vmem:[%s3] sm:$0x1]
    %v264 = vlaneseq
    %v265 = vshrl.u32 %v264, 7
    %v266 = vsub.s32 0, %v265
    %v267 = vrot.slane %v262, %v266
    %v269 = vmul.f32 %v246, %v267
    %v270 = vmul.f32 %v247, %v267
    %v271 = vmul.f32 %v248, %v267
    %v272 = vmul.f32 %v249, %v267
    %v273 = vmul.f32 %v250, %v267
    %v274 = vmul.f32 %v251, %v267
    %v275 = vmul.f32 %v252, %v267
    %v276 = vmul.f32 %v253, %v267
    %v277 = vmul.f32 %v254, %v267
    %v278 = vmul.f32 %v255, %v267
    %v279 = vmul.f32 %v256, %v267
    %v280 = vmul.f32 %v257, %v267
    %v281 = vmul.f32 %v258, %v267
    %v282 = vmul.f32 %v259, %v267
    %v283 = vmul.f32 %v260, %v267
    %v284 = vmul.f32 %v261, %v267
    %vm285 = vcmask 130048
    %v286 = vsel %vm285, %v269, 0.0
    %287 = vadd.xlane.f32.xlu0 %v286
    %v288 = vpop.xlane.xlu0 %287
    %v289 = vsel %vm285, %v270, 0.0
    %290 = vadd.xlane.f32.xlu0 %v289
    %v291 = vpop.xlane.xlu0 %290
    %v292 = vsel %vm285, %v271, 0.0
    %293 = vadd.xlane.f32.xlu0 %v292
    %v294 = vpop.xlane.xlu0 %293
    %v295 = vsel %vm285, %v272, 0.0
    %296 = vadd.xlane.f32.xlu0 %v295
    %v297 = vpop.xlane.xlu0 %296
    %v298 = vsel %vm285, %v273, 0.0
    %299 = vadd.xlane.f32.xlu0 %v298
    %v300 = vpop.xlane.xlu0 %299
    %v301 = vsel %vm285, %v274, 0.0
    %302 = vadd.xlane.f32.xlu0 %v301
    %v303 = vpop.xlane.xlu0 %302
    %v304 = vsel %vm285, %v275, 0.0
    %305 = vadd.xlane.f32.xlu0 %v304
    %v306 = vpop.xlane.xlu0 %305
    %v307 = vsel %vm285, %v276, 0.0
    %308 = vadd.xlane.f32.xlu0 %v307
    %v309 = vpop.xlane.xlu0 %308
    %v310 = vsel %vm285, %v277, 0.0
    %311 = vadd.xlane.f32.xlu0 %v310
    %v312 = vpop.xlane.xlu0 %311
    %v313 = vsel %vm285, %v278, 0.0
    %314 = vadd.xlane.f32.xlu0 %v313
    %v315 = vpop.xlane.xlu0 %314
    %v316 = vsel %vm285, %v279, 0.0
    %317 = vadd.xlane.f32.xlu0 %v316
    %v318 = vpop.xlane.xlu0 %317
    %v319 = vsel %vm285, %v280, 0.0
    %320 = vadd.xlane.f32.xlu0 %v319
    %v321 = vpop.xlane.xlu0 %320
    %v322 = vsel %vm285, %v281, 0.0
    %323 = vadd.xlane.f32.xlu0 %v322
    %v324 = vpop.xlane.xlu0 %323
    %v325 = vsel %vm285, %v282, 0.0
    %326 = vadd.xlane.f32.xlu0 %v325
    %v327 = vpop.xlane.xlu0 %326
    %v328 = vsel %vm285, %v283, 0.0
    %329 = vadd.xlane.f32.xlu0 %v328
    %v330 = vpop.xlane.xlu0 %329
    %v331 = vsel %vm285, %v284, 0.0
    %332 = vadd.xlane.f32.xlu0 %v331
    %v333 = vpop.xlane.xlu0 %332
    %s334 = smul.u32 0, 16
    %s335 = scalar_lea.vmem %s0, %s334
    %v336 = vld [vmem:[%s335] sm:$0xff]
    %v337 = vld [vmem:[%s335 + $0x8] sm:$0xff]
    %v338 = vlaneseq
    %v339 = vand.u32 %v338, 127
    %340 = vset.pattern.permute.xlu0 0
    %341 = vperm.xlu0 %340, %v336
    %v342 = vpop.permute.xlu0 %341
    %343 = vset.pattern.permute.xlu0 0
    %344 = vperm.xlu0 %343, %v337
    %v345 = vpop.permute.xlu0 %344
    %vm346 = vcmp.lt.s32.totalorder %v339, %v342
    %vm347 = vcmp.lt.s32.totalorder %v339, %v345
    %v364 = vlaneseq
    %v365 = vshrl.u32 %v364, 7
    %v366 = vsub.s32 %v339, %v365
    %v367 = vrot.slane %v288, %v366
    %v368 = vlaneseq
    %v369 = vshrl.u32 %v368, 7
    %v370 = vsub.s32 %v339, %v369
    %v371 = vrot.slane %v291, %v370
    %v372 = vlaneseq
    %v373 = vshrl.u32 %v372, 7
    %v374 = vsub.s32 %v339, %v373
    %v375 = vrot.slane %v294, %v374
    %v376 = vlaneseq
    %v377 = vshrl.u32 %v376, 7
    %v378 = vsub.s32 %v339, %v377
    %v379 = vrot.slane %v297, %v378
    %v380 = vlaneseq
    %v381 = vshrl.u32 %v380, 7
    %v382 = vsub.s32 %v339, %v381
    %v383 = vrot.slane %v300, %v382
    %v384 = vlaneseq
    %v385 = vshrl.u32 %v384, 7
    %v386 = vsub.s32 %v339, %v385
    %v387 = vrot.slane %v303, %v386
    %v388 = vlaneseq
    %v389 = vshrl.u32 %v388, 7
    %v390 = vsub.s32 %v339, %v389
    %v391 = vrot.slane %v306, %v390
    %v392 = vlaneseq
    %v393 = vshrl.u32 %v392, 7
    %v394 = vsub.s32 %v339, %v393
    %v395 = vrot.slane %v309, %v394
    %v396 = vlaneseq
    %v397 = vshrl.u32 %v396, 7
    %v398 = vsub.s32 %v339, %v397
    %v399 = vrot.slane %v312, %v398
    %v400 = vlaneseq
    %v401 = vshrl.u32 %v400, 7
    %v402 = vsub.s32 %v339, %v401
    %v403 = vrot.slane %v315, %v402
    %v404 = vlaneseq
    %v405 = vshrl.u32 %v404, 7
    %v406 = vsub.s32 %v339, %v405
    %v407 = vrot.slane %v318, %v406
    %v408 = vlaneseq
    %v409 = vshrl.u32 %v408, 7
    %v410 = vsub.s32 %v339, %v409
    %v411 = vrot.slane %v321, %v410
    %v412 = vlaneseq
    %v413 = vshrl.u32 %v412, 7
    %v414 = vsub.s32 %v339, %v413
    %v415 = vrot.slane %v324, %v414
    %v416 = vlaneseq
    %v417 = vshrl.u32 %v416, 7
    %v418 = vsub.s32 %v339, %v417
    %v419 = vrot.slane %v327, %v418
    %v420 = vlaneseq
    %v421 = vshrl.u32 %v420, 7
    %v422 = vsub.s32 %v339, %v421
    %v423 = vrot.slane %v330, %v422
    %v424 = vlaneseq
    %v425 = vshrl.u32 %v424, 7
    %v426 = vsub.s32 %v339, %v425
    %v427 = vrot.slane %v333, %v426
    %vm428 = vcmask 1041409
    %v429 = vsel %vm428, %v371, %v367
    %vm430 = vcmask 1042434
    %v431 = vsel %vm430, %v375, %v429
    %vm432 = vcmask 1043459
    %v433 = vsel %vm432, %v379, %v431
    %vm434 = vcmask 1044484
    %v435 = vsel %vm434, %v383, %v433
    %vm436 = vcmask 1045509
    %v437 = vsel %vm436, %v387, %v435
    %vm438 = vcmask 1046534
    %v439 = vsel %vm438, %v391, %v437
    %vm440 = vcmask 1047559
    %v441 = vsel %vm440, %v395, %v439
    %v442 = vsel %vm428, %v403, %v399
    %v443 = vsel %vm430, %v407, %v442
    %v444 = vsel %vm432, %v411, %v443
    %v445 = vsel %vm434, %v415, %v444
    %v446 = vsel %vm436, %v419, %v445
    %v447 = vsel %vm438, %v423, %v446
    %v448 = vsel %vm440, %v427, %v447
    %v451 = vsel %vm346, %v441, -inf
    %v452 = vsel %vm347, %v448, -inf
    %vm453 = vcmask 64512
    %v454 = vsel %vm453, %v451, -inf
    %455 = vmax.xlane.f32.xlu0 %v454
    %v456 = vpop.xlane.xlu0 %455
    %v457 = vsel %vm453, %v452, -inf
    %458 = vmax.xlane.f32.xlu0 %v457
    %v459 = vpop.xlane.xlu0 %458
    %v460 = vsub.f32 %v451, %v456
    %v461 = vsub.f32 %v452, %v459
    %v462 = vmul.f32 %v460, 1.442695
    %v463 = vpow.pop %v462
    %v464 = vmul.f32 %v461, 1.442695
    %v465 = vpow.pop %v464
    %v466 = vsel %vm453, %v463, 0.0
    %467 = vadd.xlane.f32.xlu0 %v466
    %v468 = vpop.xlane.xlu0 %467
    %v469 = vsel %vm453, %v465, 0.0
    %470 = vadd.xlane.f32.xlu0 %v469
    %v471 = vpop.xlane.xlu0 %470
    %v474 = vcombine.high %v463, %v463
    %v476 = vunpack.c.l.s4 1966171168
    %v477 = vunpack.c.0.s8 %v476
    %v478 = vlaneseq
    %v479 = vshrl.u32 %v478, 7
    %v480 = vsub.s32 %v477, %v479
    %v481 = vrot.slane %v463, %v480
    %v483 = vunpack.c.l.s4 1966171168
    %v484 = vunpack.c.0.s8 %v483
    %v485 = vlaneseq
    %v486 = vshrl.u32 %v485, 7
    %v487 = vsub.s32 %v484, %v486
    %v488 = vrot.slane %v474, %v487
    %v489 = vcombine.high %v481, %v481
    %v490 = vcombine.high %v488, %v488
    %v492 = vunpack.c.l.s4 1966171168
    %v493 = vunpack.c.0.s8 %v492
    %v494 = vlaneseq
    %v495 = vshrl.u32 %v494, 7
    %v496 = vsub.s32 %v493, %v495
    %v497 = vrot.slane %v481, %v496
    %v499 = vunpack.c.l.s4 1966171168
    %v500 = vunpack.c.0.s8 %v499
    %v501 = vlaneseq
    %v502 = vshrl.u32 %v501, 7
    %v503 = vsub.s32 %v500, %v502
    %v504 = vrot.slane %v488, %v503
    %v506 = vunpack.c.l.s4 1966171168
    %v507 = vunpack.c.0.s8 %v506
    %v508 = vlaneseq
    %v509 = vshrl.u32 %v508, 7
    %v510 = vsub.s32 %v507, %v509
    %v511 = vrot.slane %v489, %v510
    %v513 = vunpack.c.l.s4 1966171168
    %v514 = vunpack.c.0.s8 %v513
    %v515 = vlaneseq
    %v516 = vshrl.u32 %v515, 7
    %v517 = vsub.s32 %v514, %v516
    %v518 = vrot.slane %v490, %v517
    %v519 = vcombine.high %v497, %v497
    %v520 = vcombine.high %v504, %v504
    %v521 = vcombine.high %v511, %v511
    %v522 = vcombine.high %v518, %v518
    %v523 = vcombine.high %v465, %v465
    %v525 = vunpack.c.l.s4 1966171168
    %v526 = vunpack.c.0.s8 %v525
    %v527 = vlaneseq
    %v528 = vshrl.u32 %v527, 7
    %v529 = vsub.s32 %v526, %v528
    %v530 = vrot.slane %v465, %v529
    %v532 = vunpack.c.l.s4 1966171168
    %v533 = vunpack.c.0.s8 %v532
    %v534 = vlaneseq
    %v535 = vshrl.u32 %v534, 7
    %v536 = vsub.s32 %v533, %v535
    %v537 = vrot.slane %v523, %v536
    %v538 = vcombine.high %v530, %v530
    %v539 = vcombine.high %v537, %v537
    %v541 = vunpack.c.l.s4 1966171168
    %v542 = vunpack.c.0.s8 %v541
    %v543 = vlaneseq
    %v544 = vshrl.u32 %v543, 7
    %v545 = vsub.s32 %v542, %v544
    %v546 = vrot.slane %v530, %v545
    %v548 = vunpack.c.l.s4 1966171168
    %v549 = vunpack.c.0.s8 %v548
    %v550 = vlaneseq
    %v551 = vshrl.u32 %v550, 7
    %v552 = vsub.s32 %v549, %v551
    %v553 = vrot.slane %v537, %v552
    %v555 = vunpack.c.l.s4 1966171168
    %v556 = vunpack.c.0.s8 %v555
    %v557 = vlaneseq
    %v558 = vshrl.u32 %v557, 7
    %v559 = vsub.s32 %v556, %v558
    %v560 = vrot.slane %v538, %v559
    %v562 = vunpack.c.l.s4 1966171168
    %v563 = vunpack.c.0.s8 %v562
    %v564 = vlaneseq
    %v565 = vshrl.u32 %v564, 7
    %v566 = vsub.s32 %v563, %v565
    %v567 = vrot.slane %v539, %v566
    %v568 = vcombine.high %v546, %v546
    %v569 = vcombine.high %v553, %v553
    %v570 = vcombine.high %v560, %v560
    %v571 = vcombine.high %v567, %v567
    %v572 = vsel %vm453, %v497, 0
    %574 = vmatprep.subr.mxu0 0.0
    %575 = vmatpush1.msra.mxu0 %v32
    %576 = vmatprep.subr.mxu0 0.0
    %577 = vmatpush1.msra.mxu0 0.0
    %578 = vmatprep.subr.mxu0 0.0
    %579 = vmatpush1.msra.mxu0 0.0
    %580 = vmatprep.subr.mxu0 0.0
    %581 = vmatpush1.msra.mxu0 0.0
    %582 = vmatprep.subr.mxu0 0.0
    %583 = vmatpush1.msra.mxu0 0.0
    %584 = vmatprep.subr.mxu0 0.0
    %585 = vmatpush1.msra.mxu0 0.0
    %586 = vmatprep.subr.mxu0 0.0
    %587 = vmatpush1.msra.mxu0 0.0
    %588 = vmatprep.subr.mxu0 0.0
    %589 = vmatpush1.msra.mxu0 0.0
    %590 = vmatprep.subr.mxu0 0.0
    %591 = vmatpush1.msra.mxu0 0.0
    %592 = vmatprep.subr.mxu0 0.0
    %593 = vmatpush1.msra.mxu0 0.0
    %594 = vmatprep.subr.mxu0 0.0
    %595 = vmatpush1.msra.mxu0 0.0
    %596 = vmatprep.subr.mxu0 0.0
    %597 = vmatpush1.msra.mxu0 0.0
    %598 = vmatprep.subr.mxu0 0.0
    %599 = vmatpush1.msra.mxu0 0.0
    %600 = vmatprep.subr.mxu0 0.0
    %601 = vmatpush1.msra.mxu0 0.0
    %602 = vmatprep.subr.mxu0 0.0
    %603 = vmatpush1.msra.mxu0 0.0
    %604 = vmatprep.subr.mxu0 0.0
    %605 = vmatpush1.msra.mxu0 0.0
    %606 = vmatprep.subr.mxu0 0.0
    %607 = vmatpush1.msra.mxu0 0.0
    %608 = vmatprep.subr.mxu0 0.0
    %609 = vmatpush1.msra.mxu0 0.0
    %610 = vmatprep.subr.mxu0 0.0
    %611 = vmatpush1.msra.mxu0 0.0
    %612 = vmatprep.subr.mxu0 0.0
    %613 = vmatpush1.msra.mxu0 0.0
    %614 = vmatprep.subr.mxu0 0.0
    %615 = vmatpush1.msra.mxu0 0.0
    %616 = vmatprep.subr.mxu0 0.0
    %617 = vmatpush1.msra.mxu0 0.0
    %618 = vmatprep.subr.mxu0 0.0
    %619 = vmatpush1.msra.mxu0 0.0
    %620 = vmatprep.subr.mxu0 0.0
    %621 = vmatpush1.msra.mxu0 0.0
    %622 = vmatprep.subr.mxu0 0.0
    %623 = vmatpush1.msra.mxu0 0.0
    %624 = vmatprep.subr.mxu0 0.0
    %625 = vmatpush1.msra.mxu0 0.0
    %626 = vmatprep.subr.mxu0 0.0
    %627 = vmatpush1.msra.mxu0 0.0
    %628 = vmatprep.subr.mxu0 0.0
    %629 = vmatpush1.msra.mxu0 0.0
    %630 = vmatprep.subr.mxu0 0.0
    %631 = vmatpush1.msra.mxu0 0.0
    %632 = vmatprep.subr.mxu0 0.0
    %633 = vmatpush1.msra.mxu0 0.0
    %634 = vmatprep.subr.mxu0 0.0
    %635 = vmatpush1.msra.mxu0 0.0
    %636 = vmatprep.subr.mxu0 0.0
    %637 = vmatpush1.msra.mxu0 0.0
    %638 = vmatprep.mubr.f32.mxu0 0.0
    %639 = vmatmul.mubr.f32.gmra.mrb[0].mxu0 %v572
    %v640 = vpop.f32.mrb[0].mxu0
    %v641 = vadd.f32 0.0, %v640
    %v642 = vpop.f32.mrb[0].mxu0
    %643 = vdwg.mxu0
    %v644 = vsel %vm453, %v511, 0
    %646 = vmatprep.subr.mxu0 0.0
    %647 = vmatpush1.msra.mxu0 %v33
    %648 = vmatprep.subr.mxu0 0.0
    %649 = vmatpush1.msra.mxu0 0.0
    %650 = vmatprep.subr.mxu0 0.0
    %651 = vmatpush1.msra.mxu0 0.0
    %652 = vmatprep.subr.mxu0 0.0
    %653 = vmatpush1.msra.mxu0 0.0
    %654 = vmatprep.subr.mxu0 0.0
    %655 = vmatpush1.msra.mxu0 0.0
    %656 = vmatprep.subr.mxu0 0.0
    %657 = vmatpush1.msra.mxu0 0.0
    %658 = vmatprep.subr.mxu0 0.0
    %659 = vmatpush1.msra.mxu0 0.0
    %660 = vmatprep.subr.mxu0 0.0
    %661 = vmatpush1.msra.mxu0 0.0
    %662 = vmatprep.subr.mxu0 0.0
    %663 = vmatpush1.msra.mxu0 0.0
    %664 = vmatprep.subr.mxu0 0.0
    %665 = vmatpush1.msra.mxu0 0.0
    %666 = vmatprep.subr.mxu0 0.0
    %667 = vmatpush1.msra.mxu0 0.0
    %668 = vmatprep.subr.mxu0 0.0
    %669 = vmatpush1.msra.mxu0 0.0
    %670 = vmatprep.subr.mxu0 0.0
    %671 = vmatpush1.msra.mxu0 0.0
    %672 = vmatprep.subr.mxu0 0.0
    %673 = vmatpush1.msra.mxu0 0.0
    %674 = vmatprep.subr.mxu0 0.0
    %675 = vmatpush1.msra.mxu0 0.0
    %676 = vmatprep.subr.mxu0 0.0
    %677 = vmatpush1.msra.mxu0 0.0
    %678 = vmatprep.subr.mxu0 0.0
    %679 = vmatpush1.msra.mxu0 0.0
    %680 = vmatprep.subr.mxu0 0.0
    %681 = vmatpush1.msra.mxu0 0.0
    %682 = vmatprep.subr.mxu0 0.0
    %683 = vmatpush1.msra.mxu0 0.0
    %684 = vmatprep.subr.mxu0 0.0
    %685 = vmatpush1.msra.mxu0 0.0
    %686 = vmatprep.subr.mxu0 0.0
    %687 = vmatpush1.msra.mxu0 0.0
    %688 = vmatprep.subr.mxu0 0.0
    %689 = vmatpush1.msra.mxu0 0.0
    %690 = vmatprep.subr.mxu0 0.0
    %691 = vmatpush1.msra.mxu0 0.0
    %692 = vmatprep.subr.mxu0 0.0
    %693 = vmatpush1.msra.mxu0 0.0
    %694 = vmatprep.subr.mxu0 0.0
    %695 = vmatpush1.msra.mxu0 0.0
    %696 = vmatprep.subr.mxu0 0.0
    %697 = vmatpush1.msra.mxu0 0.0
    %698 = vmatprep.subr.mxu0 0.0
    %699 = vmatpush1.msra.mxu0 0.0
    %700 = vmatprep.subr.mxu0 0.0
    %701 = vmatpush1.msra.mxu0 0.0
    %702 = vmatprep.subr.mxu0 0.0
    %703 = vmatpush1.msra.mxu0 0.0
    %704 = vmatprep.subr.mxu0 0.0
    %705 = vmatpush1.msra.mxu0 0.0
    %706 = vmatprep.subr.mxu0 0.0
    %707 = vmatpush1.msra.mxu0 0.0
    %708 = vmatprep.subr.mxu0 0.0
    %709 = vmatpush1.msra.mxu0 0.0
    %710 = vmatprep.mubr.f32.mxu0 0.0
    %711 = vmatmul.mubr.f32.gmra.mrb[0].mxu0 %v644
    %v712 = vpop.f32.mrb[0].mxu0
    %v713 = vadd.f32 0.0, %v712
    %v714 = vpop.f32.mrb[0].mxu0
    %715 = vdwg.mxu0
    %v716 = vsel %vm453, %v519, 0
    %718 = vmatprep.subr.mxu0 0.0
    %719 = vmatpush1.msra.mxu0 %v34
    %720 = vmatprep.subr.mxu0 0.0
    %721 = vmatpush1.msra.mxu0 0.0
    %722 = vmatprep.subr.mxu0 0.0
    %723 = vmatpush1.msra.mxu0 0.0
    %724 = vmatprep.subr.mxu0 0.0
    %725 = vmatpush1.msra.mxu0 0.0
    %726 = vmatprep.subr.mxu0 0.0
    %727 = vmatpush1.msra.mxu0 0.0
    %728 = vmatprep.subr.mxu0 0.0
    %729 = vmatpush1.msra.mxu0 0.0
    %730 = vmatprep.subr.mxu0 0.0
    %731 = vmatpush1.msra.mxu0 0.0
    %732 = vmatprep.subr.mxu0 0.0
    %733 = vmatpush1.msra.mxu0 0.0
    %734 = vmatprep.subr.mxu0 0.0
    %735 = vmatpush1.msra.mxu0 0.0
    %736 = vmatprep.subr.mxu0 0.0
    %737 = vmatpush1.msra.mxu0 0.0
    %738 = vmatprep.subr.mxu0 0.0
    %739 = vmatpush1.msra.mxu0 0.0
    %740 = vmatprep.subr.mxu0 0.0
    %741 = vmatpush1.msra.mxu0 0.0
    %742 = vmatprep.subr.mxu0 0.0
    %743 = vmatpush1.msra.mxu0 0.0
    %744 = vmatprep.subr.mxu0 0.0
    %745 = vmatpush1.msra.mxu0 0.0
    %746 = vmatprep.subr.mxu0 0.0
    %747 = vmatpush1.msra.mxu0 0.0
    %748 = vmatprep.subr.mxu0 0.0
    %749 = vmatpush1.msra.mxu0 0.0
    %750 = vmatprep.subr.mxu0 0.0
    %751 = vmatpush1.msra.mxu0 0.0
    %752 = vmatprep.subr.mxu0 0.0
    %753 = vmatpush1.msra.mxu0 0.0
    %754 = vmatprep.subr.mxu0 0.0
    %755 = vmatpush1.msra.mxu0 0.0
    %756 = vmatprep.subr.mxu0 0.0
    %757 = vmatpush1.msra.mxu0 0.0
    %758 = vmatprep.subr.mxu0 0.0
    %759 = vmatpush1.msra.mxu0 0.0
    %760 = vmatprep.subr.mxu0 0.0
    %761 = vmatpush1.msra.mxu0 0.0
    %762 = vmatprep.subr.mxu0 0.0
    %763 = vmatpush1.msra.mxu0 0.0
    %764 = vmatprep.subr.mxu0 0.0
    %765 = vmatpush1.msra.mxu0 0.0
    %766 = vmatprep.subr.mxu0 0.0
    %767 = vmatpush1.msra.mxu0 0.0
    %768 = vmatprep.subr.mxu0 0.0
    %769 = vmatpush1.msra.mxu0 0.0
    %770 = vmatprep.subr.mxu0 0.0
    %771 = vmatpush1.msra.mxu0 0.0
    %772 = vmatprep.subr.mxu0 0.0
    %773 = vmatpush1.msra.mxu0 0.0
    %774 = vmatprep.subr.mxu0 0.0
    %775 = vmatpush1.msra.mxu0 0.0
    %776 = vmatprep.subr.mxu0 0.0
    %777 = vmatpush1.msra.mxu0 0.0
    %778 = vmatprep.subr.mxu0 0.0
    %779 = vmatpush1.msra.mxu0 0.0
    %780 = vmatprep.subr.mxu0 0.0
    %781 = vmatpush1.msra.mxu0 0.0
    %782 = vmatprep.mubr.f32.mxu0 0.0
    %783 = vmatmul.mubr.f32.gmra.mrb[0].mxu0 %v716
    %v784 = vpop.f32.mrb[0].mxu0
    %v785 = vadd.f32 0.0, %v784
    %v786 = vpop.f32.mrb[0].mxu0
    %787 = vdwg.mxu0
    %v788 = vsel %vm453, %v521, 0
    %790 = vmatprep.subr.mxu0 0.0
    %791 = vmatpush1.msra.mxu0 %v35
    %792 = vmatprep.subr.mxu0 0.0
    %793 = vmatpush1.msra.mxu0 0.0
    %794 = vmatprep.subr.mxu0 0.0
    %795 = vmatpush1.msra.mxu0 0.0
    %796 = vmatprep.subr.mxu0 0.0
    %797 = vmatpush1.msra.mxu0 0.0
    %798 = vmatprep.subr.mxu0 0.0
    %799 = vmatpush1.msra.mxu0 0.0
    %800 = vmatprep.subr.mxu0 0.0
    %801 = vmatpush1.msra.mxu0 0.0
    %802 = vmatprep.subr.mxu0 0.0
    %803 = vmatpush1.msra.mxu0 0.0
    %804 = vmatprep.subr.mxu0 0.0
    %805 = vmatpush1.msra.mxu0 0.0
    %806 = vmatprep.subr.mxu0 0.0
    %807 = vmatpush1.msra.mxu0 0.0
    %808 = vmatprep.subr.mxu0 0.0
    %809 = vmatpush1.msra.mxu0 0.0
    %810 = vmatprep.subr.mxu0 0.0
    %811 = vmatpush1.msra.mxu0 0.0
    %812 = vmatprep.subr.mxu0 0.0
    %813 = vmatpush1.msra.mxu0 0.0
    %814 = vmatprep.subr.mxu0 0.0
    %815 = vmatpush1.msra.mxu0 0.0
    %816 = vmatprep.subr.mxu0 0.0
    %817 = vmatpush1.msra.mxu0 0.0
    %818 = vmatprep.subr.mxu0 0.0
    %819 = vmatpush1.msra.mxu0 0.0
    %820 = vmatprep.subr.mxu0 0.0
    %821 = vmatpush1.msra.mxu0 0.0
    %822 = vmatprep.subr.mxu0 0.0
    %823 = vmatpush1.msra.mxu0 0.0
    %824 = vmatprep.subr.mxu0 0.0
    %825 = vmatpush1.msra.mxu0 0.0
    %826 = vmatprep.subr.mxu0 0.0
    %827 = vmatpush1.msra.mxu0 0.0
    %828 = vmatprep.subr.mxu0 0.0
    %829 = vmatpush1.msra.mxu0 0.0
    %830 = vmatprep.subr.mxu0 0.0
    %831 = vmatpush1.msra.mxu0 0.0
    %832 = vmatprep.subr.mxu0 0.0
    %833 = vmatpush1.msra.mxu0 0.0
    %834 = vmatprep.subr.mxu0 0.0
    %835 = vmatpush1.msra.mxu0 0.0
    %836 = vmatprep.subr.mxu0 0.0
    %837 = vmatpush1.msra.mxu0 0.0
    %838 = vmatprep.subr.mxu0 0.0
    %839 = vmatpush1.msra.mxu0 0.0
    %840 = vmatprep.subr.mxu0 0.0
    %841 = vmatpush1.msra.mxu0 0.0
    %842 = vmatprep.subr.mxu0 0.0
    %843 = vmatpush1.msra.mxu0 0.0
    %844 = vmatprep.subr.mxu0 0.0
    %845 = vmatpush1.msra.mxu0 0.0
    %846 = vmatprep.subr.mxu0 0.0
    %847 = vmatpush1.msra.mxu0 0.0
    %848 = vmatprep.subr.mxu0 0.0
    %849 = vmatpush1.msra.mxu0 0.0
    %850 = vmatprep.subr.mxu0 0.0
    %851 = vmatpush1.msra.mxu0 0.0
    %852 = vmatprep.subr.mxu0 0.0
    %853 = vmatpush1.msra.mxu0 0.0
    %854 = vmatprep.mubr.f32.mxu0 0.0
    %855 = vmatmul.mubr.f32.gmra.mrb[0].mxu0 %v788
    %v856 = vpop.f32.mrb[0].mxu0
    %v857 = vadd.f32 0.0, %v856
    %v858 = vpop.f32.mrb[0].mxu0
    %859 = vdwg.mxu0
    %v860 = vsel %vm453, %v504, 0
    %862 = vmatprep.subr.mxu0 0.0
    %863 = vmatpush1.msra.mxu0 %v36
    %864 = vmatprep.subr.mxu0 0.0
    %865 = vmatpush1.msra.mxu0 0.0
    %866 = vmatprep.subr.mxu0 0.0
    %867 = vmatpush1.msra.mxu0 0.0
    %868 = vmatprep.subr.mxu0 0.0
    %869 = vmatpush1.msra.mxu0 0.0
    %870 = vmatprep.subr.mxu0 0.0
    %871 = vmatpush1.msra.mxu0 0.0
    %872 = vmatprep.subr.mxu0 0.0
    %873 = vmatpush1.msra.mxu0 0.0
    %874 = vmatprep.subr.mxu0 0.0
    %875 = vmatpush1.msra.mxu0 0.0
    %876 = vmatprep.subr.mxu0 0.0
    %877 = vmatpush1.msra.mxu0 0.0
    %878 = vmatprep.subr.mxu0 0.0
    %879 = vmatpush1.msra.mxu0 0.0
    %880 = vmatprep.subr.mxu0 0.0
    %881 = vmatpush1.msra.mxu0 0.0
    %882 = vmatprep.subr.mxu0 0.0
    %883 = vmatpush1.msra.mxu0 0.0
    %884 = vmatprep.subr.mxu0 0.0
    %885 = vmatpush1.msra.mxu0 0.0
    %886 = vmatprep.subr.mxu0 0.0
    %887 = vmatpush1.msra.mxu0 0.0
    %888 = vmatprep.subr.mxu0 0.0
    %889 = vmatpush1.msra.mxu0 0.0
    %890 = vmatprep.subr.mxu0 0.0
    %891 = vmatpush1.msra.mxu0 0.0
    %892 = vmatprep.subr.mxu0 0.0
    %893 = vmatpush1.msra.mxu0 0.0
    %894 = vmatprep.subr.mxu0 0.0
    %895 = vmatpush1.msra.mxu0 0.0
    %896 = vmatprep.subr.mxu0 0.0
    %897 = vmatpush1.msra.mxu0 0.0
    %898 = vmatprep.subr.mxu0 0.0
    %899 = vmatpush1.msra.mxu0 0.0
    %900 = vmatprep.subr.mxu0 0.0
    %901 = vmatpush1.msra.mxu0 0.0
    %902 = vmatprep.subr.mxu0 0.0
    %903 = vmatpush1.msra.mxu0 0.0
    %904 = vmatprep.subr.mxu0 0.0
    %905 = vmatpush1.msra.mxu0 0.0
    %906 = vmatprep.subr.mxu0 0.0
    %907 = vmatpush1.msra.mxu0 0.0
    %908 = vmatprep.subr.mxu0 0.0
    %909 = vmatpush1.msra.mxu0 0.0
    %910 = vmatprep.subr.mxu0 0.0
    %911 = vmatpush1.msra.mxu0 0.0
    %912 = vmatprep.subr.mxu0 0.0
    %913 = vmatpush1.msra.mxu0 0.0
    %914 = vmatprep.subr.mxu0 0.0
    %915 = vmatpush1.msra.mxu0 0.0
    %916 = vmatprep.subr.mxu0 0.0
    %917 = vmatpush1.msra.mxu0 0.0
    %918 = vmatprep.subr.mxu0 0.0
    %919 = vmatpush1.msra.mxu0 0.0
    %920 = vmatprep.subr.mxu0 0.0
    %921 = vmatpush1.msra.mxu0 0.0
    %922 = vmatprep.subr.mxu0 0.0
    %923 = vmatpush1.msra.mxu0 0.0
    %924 = vmatprep.subr.mxu0 0.0
    %925 = vmatpush1.msra.mxu0 0.0
    %926 = vmatprep.mubr.f32.mxu0 0.0
    %927 = vmatmul.mubr.f32.gmra.mrb[0].mxu0 %v860
    %v928 = vpop.f32.mrb[0].mxu0
    %v929 = vadd.f32 0.0, %v928
    %v930 = vpop.f32.mrb[0].mxu0
    %931 = vdwg.mxu0
    %v932 = vsel %vm453, %v518, 0
    %934 = vmatprep.subr.mxu0 0.0
    %935 = vmatpush1.msra.mxu0 %v37
    %936 = vmatprep.subr.mxu0 0.0
    %937 = vmatpush1.msra.mxu0 0.0
    %938 = vmatprep.subr.mxu0 0.0
    %939 = vmatpush1.msra.mxu0 0.0
    %940 = vmatprep.subr.mxu0 0.0
    %941 = vmatpush1.msra.mxu0 0.0
    %942 = vmatprep.subr.mxu0 0.0
    %943 = vmatpush1.msra.mxu0 0.0
    %944 = vmatprep.subr.mxu0 0.0
    %945 = vmatpush1.msra.mxu0 0.0
    %946 = vmatprep.subr.mxu0 0.0
    %947 = vmatpush1.msra.mxu0 0.0
    %948 = vmatprep.subr.mxu0 0.0
    %949 = vmatpush1.msra.mxu0 0.0
    %950 = vmatprep.subr.mxu0 0.0
    %951 = vmatpush1.msra.mxu0 0.0
    %952 = vmatprep.subr.mxu0 0.0
    %953 = vmatpush1.msra.mxu0 0.0
    %954 = vmatprep.subr.mxu0 0.0
    %955 = vmatpush1.msra.mxu0 0.0
    %956 = vmatprep.subr.mxu0 0.0
    %957 = vmatpush1.msra.mxu0 0.0
    %958 = vmatprep.subr.mxu0 0.0
    %959 = vmatpush1.msra.mxu0 0.0
    %960 = vmatprep.subr.mxu0 0.0
    %961 = vmatpush1.msra.mxu0 0.0
    %962 = vmatprep.subr.mxu0 0.0
    %963 = vmatpush1.msra.mxu0 0.0
    %964 = vmatprep.subr.mxu0 0.0
    %965 = vmatpush1.msra.mxu0 0.0
    %966 = vmatprep.subr.mxu0 0.0
    %967 = vmatpush1.msra.mxu0 0.0
    %968 = vmatprep.subr.mxu0 0.0
    %969 = vmatpush1.msra.mxu0 0.0
    %970 = vmatprep.subr.mxu0 0.0
    %971 = vmatpush1.msra.mxu0 0.0
    %972 = vmatprep.subr.mxu0 0.0
    %973 = vmatpush1.msra.mxu0 0.0
    %974 = vmatprep.subr.mxu0 0.0
    %975 = vmatpush1.msra.mxu0 0.0
    %976 = vmatprep.subr.mxu0 0.0
    %977 = vmatpush1.msra.mxu0 0.0
    %978 = vmatprep.subr.mxu0 0.0
    %979 = vmatpush1.msra.mxu0 0.0
    %980 = vmatprep.subr.mxu0 0.0
    %981 = vmatpush1.msra.mxu0 0.0
    %982 = vmatprep.subr.mxu0 0.0
    %983 = vmatpush1.msra.mxu0 0.0
    %984 = vmatprep.subr.mxu0 0.0
    %985 = vmatpush1.msra.mxu0 0.0
    %986 = vmatprep.subr.mxu0 0.0
    %987 = vmatpush1.msra.mxu0 0.0
    %988 = vmatprep.subr.mxu0 0.0
    %989 = vmatpush1.msra.mxu0 0.0
    %990 = vmatprep.subr.mxu0 0.0
    %991 = vmatpush1.msra.mxu0 0.0
    %992 = vmatprep.subr.mxu0 0.0
    %993 = vmatpush1.msra.mxu0 0.0
    %994 = vmatprep.subr.mxu0 0.0
    %995 = vmatpush1.msra.mxu0 0.0
    %996 = vmatprep.subr.mxu0 0.0
    %997 = vmatpush1.msra.mxu0 0.0
    %998 = vmatprep.mubr.f32.mxu0 0.0
    %999 = vmatmul.mubr.f32.gmra.mrb[0].mxu0 %v932
    %v1000 = vpop.f32.mrb[0].mxu0
    %v1001 = vadd.f32 0.0, %v1000
    %v1002 = vpop.f32.mrb[0].mxu0
    %1003 = vdwg.mxu0
    %v1004 = vsel %vm453, %v520, 0
    %1006 = vmatprep.subr.mxu0 0.0
    %1007 = vmatpush1.msra.mxu0 %v38
    %1008 = vmatprep.subr.mxu0 0.0
    %1009 = vmatpush1.msra.mxu0 0.0
    %1010 = vmatprep.subr.mxu0 0.0
    %1011 = vmatpush1.msra.mxu0 0.0
    %1012 = vmatprep.subr.mxu0 0.0
    %1013 = vmatpush1.msra.mxu0 0.0
    %1014 = vmatprep.subr.mxu0 0.0
    %1015 = vmatpush1.msra.mxu0 0.0
    %1016 = vmatprep.subr.mxu0 0.0
    %1017 = vmatpush1.msra.mxu0 0.0
    %1018 = vmatprep.subr.mxu0 0.0
    %1019 = vmatpush1.msra.mxu0 0.0
    %1020 = vmatprep.subr.mxu0 0.0
    %1021 = vmatpush1.msra.mxu0 0.0
    %1022 = vmatprep.subr.mxu0 0.0
    %1023 = vmatpush1.msra.mxu0 0.0
    %1024 = vmatprep.subr.mxu0 0.0
    %1025 = vmatpush1.msra.mxu0 0.0
    %1026 = vmatprep.subr.mxu0 0.0
    %1027 = vmatpush1.msra.mxu0 0.0
    %1028 = vmatprep.subr.mxu0 0.0
    %1029 = vmatpush1.msra.mxu0 0.0
    %1030 = vmatprep.subr.mxu0 0.0
    %1031 = vmatpush1.msra.mxu0 0.0
    %1032 = vmatprep.subr.mxu0 0.0
    %1033 = vmatpush1.msra.mxu0 0.0
    %1034 = vmatprep.subr.mxu0 0.0
    %1035 = vmatpush1.msra.mxu0 0.0
    %1036 = vmatprep.subr.mxu0 0.0
    %1037 = vmatpush1.msra.mxu0 0.0
    %1038 = vmatprep.subr.mxu0 0.0
    %1039 = vmatpush1.msra.mxu0 0.0
    %1040 = vmatprep.subr.mxu0 0.0
    %1041 = vmatpush1.msra.mxu0 0.0
    %1042 = vmatprep.subr.mxu0 0.0
    %1043 = vmatpush1.msra.mxu0 0.0
    %1044 = vmatprep.subr.mxu0 0.0
    %1045 = vmatpush1.msra.mxu0 0.0
    %1046 = vmatprep.subr.mxu0 0.0
    %1047 = vmatpush1.msra.mxu0 0.0
    %1048 = vmatprep.subr.mxu0 0.0
    %1049 = vmatpush1.msra.mxu0 0.0
    %1050 = vmatprep.subr.mxu0 0.0
    %1051 = vmatpush1.msra.mxu0 0.0
    %1052 = vmatprep.subr.mxu0 0.0
    %1053 = vmatpush1.msra.mxu0 0.0
    %1054 = vmatprep.subr.mxu0 0.0
    %1055 = vmatpush1.msra.mxu0 0.0
    %1056 = vmatprep.subr.mxu0 0.0
    %1057 = vmatpush1.msra.mxu0 0.0
    %1058 = vmatprep.subr.mxu0 0.0
    %1059 = vmatpush1.msra.mxu0 0.0
    %1060 = vmatprep.subr.mxu0 0.0
    %1061 = vmatpush1.msra.mxu0 0.0
    %1062 = vmatprep.subr.mxu0 0.0
    %1063 = vmatpush1.msra.mxu0 0.0
    %1064 = vmatprep.subr.mxu0 0.0
    %1065 = vmatpush1.msra.mxu0 0.0
    %1066 = vmatprep.subr.mxu0 0.0
    %1067 = vmatpush1.msra.mxu0 0.0
    %1068 = vmatprep.subr.mxu0 0.0
    %1069 = vmatpush1.msra.mxu0 0.0
    %1070 = vmatprep.mubr.f32.mxu0 0.0
    %1071 = vmatmul.mubr.f32.gmra.mrb[0].mxu0 %v1004
    %v1072 = vpop.f32.mrb[0].mxu0
    %v1073 = vadd.f32 0.0, %v1072
    %v1074 = vpop.f32.mrb[0].mxu0
    %1075 = vdwg.mxu0
    %v1076 = vsel %vm453, %v522, 0
    %1078 = vmatprep.subr.mxu0 0.0
    %1079 = vmatpush1.msra.mxu0 %v39
    %1080 = vmatprep.subr.mxu0 0.0
    %1081 = vmatpush1.msra.mxu0 0.0
    %1082 = vmatprep.subr.mxu0 0.0
    %1083 = vmatpush1.msra.mxu0 0.0
    %1084 = vmatprep.subr.mxu0 0.0
    %1085 = vmatpush1.msra.mxu0 0.0
    %1086 = vmatprep.subr.mxu0 0.0
    %1087 = vmatpush1.msra.mxu0 0.0
    %1088 = vmatprep.subr.mxu0 0.0
    %1089 = vmatpush1.msra.mxu0 0.0
    %1090 = vmatprep.subr.mxu0 0.0
    %1091 = vmatpush1.msra.mxu0 0.0
    %1092 = vmatprep.subr.mxu0 0.0
    %1093 = vmatpush1.msra.mxu0 0.0
    %1094 = vmatprep.subr.mxu0 0.0
    %1095 = vmatpush1.msra.mxu0 0.0
    %1096 = vmatprep.subr.mxu0 0.0
    %1097 = vmatpush1.msra.mxu0 0.0
    %1098 = vmatprep.subr.mxu0 0.0
    %1099 = vmatpush1.msra.mxu0 0.0
    %1100 = vmatprep.subr.mxu0 0.0
    %1101 = vmatpush1.msra.mxu0 0.0
    %1102 = vmatprep.subr.mxu0 0.0
    %1103 = vmatpush1.msra.mxu0 0.0
    %1104 = vmatprep.subr.mxu0 0.0
    %1105 = vmatpush1.msra.mxu0 0.0
    %1106 = vmatprep.subr.mxu0 0.0
    %1107 = vmatpush1.msra.mxu0 0.0
    %1108 = vmatprep.subr.mxu0 0.0
    %1109 = vmatpush1.msra.mxu0 0.0
    %1110 = vmatprep.subr.mxu0 0.0
    %1111 = vmatpush1.msra.mxu0 0.0
    %1112 = vmatprep.subr.mxu0 0.0
    %1113 = vmatpush1.msra.mxu0 0.0
    %1114 = vmatprep.subr.mxu0 0.0
    %1115 = vmatpush1.msra.mxu0 0.0
    %1116 = vmatprep.subr.mxu0 0.0
    %1117 = vmatpush1.msra.mxu0 0.0
    %1118 = vmatprep.subr.mxu0 0.0
    %1119 = vmatpush1.msra.mxu0 0.0
    %1120 = vmatprep.subr.mxu0 0.0
    %1121 = vmatpush1.msra.mxu0 0.0
    %1122 = vmatprep.subr.mxu0 0.0
    %1123 = vmatpush1.msra.mxu0 0.0
    %1124 = vmatprep.subr.mxu0 0.0
    %1125 = vmatpush1.msra.mxu0 0.0
    %1126 = vmatprep.subr.mxu0 0.0
    %1127 = vmatpush1.msra.mxu0 0.0
    %1128 = vmatprep.subr.mxu0 0.0
    %1129 = vmatpush1.msra.mxu0 0.0
    %1130 = vmatprep.subr.mxu0 0.0
    %1131 = vmatpush1.msra.mxu0 0.0
    %1132 = vmatprep.subr.mxu0 0.0
    %1133 = vmatpush1.msra.mxu0 0.0
    %1134 = vmatprep.subr.mxu0 0.0
    %1135 = vmatpush1.msra.mxu0 0.0
    %1136 = vmatprep.subr.mxu0 0.0
    %1137 = vmatpush1.msra.mxu0 0.0
    %1138 = vmatprep.subr.mxu0 0.0
    %1139 = vmatpush1.msra.mxu0 0.0
    %1140 = vmatprep.subr.mxu0 0.0
    %1141 = vmatpush1.msra.mxu0 0.0
    %1142 = vmatprep.mubr.f32.mxu0 0.0
    %1143 = vmatmul.mubr.f32.gmra.mrb[0].mxu0 %v1076
    %v1144 = vpop.f32.mrb[0].mxu0
    %v1145 = vadd.f32 0.0, %v1144
    %v1146 = vpop.f32.mrb[0].mxu0
    %1147 = vdwg.mxu0
    %v1148 = vsel %vm453, %v546, 0
    %1150 = vmatprep.subr.mxu0 0.0
    %1151 = vmatpush1.msra.mxu0 %v40
    %1152 = vmatprep.subr.mxu0 0.0
    %1153 = vmatpush1.msra.mxu0 0.0
    %1154 = vmatprep.subr.mxu0 0.0
    %1155 = vmatpush1.msra.mxu0 0.0
    %1156 = vmatprep.subr.mxu0 0.0
    %1157 = vmatpush1.msra.mxu0 0.0
    %1158 = vmatprep.subr.mxu0 0.0
    %1159 = vmatpush1.msra.mxu0 0.0
    %1160 = vmatprep.subr.mxu0 0.0
    %1161 = vmatpush1.msra.mxu0 0.0
    %1162 = vmatprep.subr.mxu0 0.0
    %1163 = vmatpush1.msra.mxu0 0.0
    %1164 = vmatprep.subr.mxu0 0.0
    %1165 = vmatpush1.msra.mxu0 0.0
    %1166 = vmatprep.subr.mxu0 0.0
    %1167 = vmatpush1.msra.mxu0 0.0
    %1168 = vmatprep.subr.mxu0 0.0
    %1169 = vmatpush1.msra.mxu0 0.0
    %1170 = vmatprep.subr.mxu0 0.0
    %1171 = vmatpush1.msra.mxu0 0.0
    %1172 = vmatprep.subr.mxu0 0.0
    %1173 = vmatpush1.msra.mxu0 0.0
    %1174 = vmatprep.subr.mxu0 0.0
    %1175 = vmatpush1.msra.mxu0 0.0
    %1176 = vmatprep.subr.mxu0 0.0
    %1177 = vmatpush1.msra.mxu0 0.0
    %1178 = vmatprep.subr.mxu0 0.0
    %1179 = vmatpush1.msra.mxu0 0.0
    %1180 = vmatprep.subr.mxu0 0.0
    %1181 = vmatpush1.msra.mxu0 0.0
    %1182 = vmatprep.subr.mxu0 0.0
    %1183 = vmatpush1.msra.mxu0 0.0
    %1184 = vmatprep.subr.mxu0 0.0
    %1185 = vmatpush1.msra.mxu0 0.0
    %1186 = vmatprep.subr.mxu0 0.0
    %1187 = vmatpush1.msra.mxu0 0.0
    %1188 = vmatprep.subr.mxu0 0.0
    %1189 = vmatpush1.msra.mxu0 0.0
    %1190 = vmatprep.subr.mxu0 0.0
    %1191 = vmatpush1.msra.mxu0 0.0
    %1192 = vmatprep.subr.mxu0 0.0
    %1193 = vmatpush1.msra.mxu0 0.0
    %1194 = vmatprep.subr.mxu0 0.0
    %1195 = vmatpush1.msra.mxu0 0.0
    %1196 = vmatprep.subr.mxu0 0.0
    %1197 = vmatpush1.msra.mxu0 0.0
    %1198 = vmatprep.subr.mxu0 0.0
    %1199 = vmatpush1.msra.mxu0 0.0
    %1200 = vmatprep.subr.mxu0 0.0
    %1201 = vmatpush1.msra.mxu0 0.0
    %1202 = vmatprep.subr.mxu0 0.0
    %1203 = vmatpush1.msra.mxu0 0.0
    %1204 = vmatprep.subr.mxu0 0.0
    %1205 = vmatpush1.msra.mxu0 0.0
    %1206 = vmatprep.subr.mxu0 0.0
    %1207 = vmatpush1.msra.mxu0 0.0
    %1208 = vmatprep.subr.mxu0 0.0
    %1209 = vmatpush1.msra.mxu0 0.0
    %1210 = vmatprep.subr.mxu0 0.0
    %1211 = vmatpush1.msra.mxu0 0.0
    %1212 = vmatprep.subr.mxu0 0.0
    %1213 = vmatpush1.msra.mxu0 0.0
    %1214 = vmatprep.mubr.f32.mxu0 0.0
    %1215 = vmatmul.mubr.f32.gmra.mrb[0].mxu0 %v1148
    %v1216 = vpop.f32.mrb[0].mxu0
    %v1217 = vadd.f32 0.0, %v1216
    %v1218 = vpop.f32.mrb[0].mxu0
    %1219 = vdwg.mxu0
    %v1220 = vsel %vm453, %v560, 0
    %1222 = vmatprep.subr.mxu0 0.0
    %1223 = vmatpush1.msra.mxu0 %v41
    %1224 = vmatprep.subr.mxu0 0.0
    %1225 = vmatpush1.msra.mxu0 0.0
    %1226 = vmatprep.subr.mxu0 0.0
    %1227 = vmatpush1.msra.mxu0 0.0
    %1228 = vmatprep.subr.mxu0 0.0
    %1229 = vmatpush1.msra.mxu0 0.0
    %1230 = vmatprep.subr.mxu0 0.0
    %1231 = vmatpush1.msra.mxu0 0.0
    %1232 = vmatprep.subr.mxu0 0.0
    %1233 = vmatpush1.msra.mxu0 0.0
    %1234 = vmatprep.subr.mxu0 0.0
    %1235 = vmatpush1.msra.mxu0 0.0
    %1236 = vmatprep.subr.mxu0 0.0
    %1237 = vmatpush1.msra.mxu0 0.0
    %1238 = vmatprep.subr.mxu0 0.0
    %1239 = vmatpush1.msra.mxu0 0.0
    %1240 = vmatprep.subr.mxu0 0.0
    %1241 = vmatpush1.msra.mxu0 0.0
    %1242 = vmatprep.subr.mxu0 0.0
    %1243 = vmatpush1.msra.mxu0 0.0
    %1244 = vmatprep.subr.mxu0 0.0
    %1245 = vmatpush1.msra.mxu0 0.0
    %1246 = vmatprep.subr.mxu0 0.0
    %1247 = vmatpush1.msra.mxu0 0.0
    %1248 = vmatprep.subr.mxu0 0.0
    %1249 = vmatpush1.msra.mxu0 0.0
    %1250 = vmatprep.subr.mxu0 0.0
    %1251 = vmatpush1.msra.mxu0 0.0
    %1252 = vmatprep.subr.mxu0 0.0
    %1253 = vmatpush1.msra.mxu0 0.0
    %1254 = vmatprep.subr.mxu0 0.0
    %1255 = vmatpush1.msra.mxu0 0.0
    %1256 = vmatprep.subr.mxu0 0.0
    %1257 = vmatpush1.msra.mxu0 0.0
    %1258 = vmatprep.subr.mxu0 0.0
    %1259 = vmatpush1.msra.mxu0 0.0
    %1260 = vmatprep.subr.mxu0 0.0
    %1261 = vmatpush1.msra.mxu0 0.0
    %1262 = vmatprep.subr.mxu0 0.0
    %1263 = vmatpush1.msra.mxu0 0.0
    %1264 = vmatprep.subr.mxu0 0.0
    %1265 = vmatpush1.msra.mxu0 0.0
    %1266 = vmatprep.subr.mxu0 0.0
    %1267 = vmatpush1.msra.mxu0 0.0
    %1268 = vmatprep.subr.mxu0 0.0
    %1269 = vmatpush1.msra.mxu0 0.0
    %1270 = vmatprep.subr.mxu0 0.0
    %1271 = vmatpush1.msra.mxu0 0.0
    %1272 = vmatprep.subr.mxu0 0.0
    %1273 = vmatpush1.msra.mxu0 0.0
    %1274 = vmatprep.subr.mxu0 0.0
    %1275 = vmatpush1.msra.mxu0 0.0
    %1276 = vmatprep.subr.mxu0 0.0
    %1277 = vmatpush1.msra.mxu0 0.0
    %1278 = vmatprep.subr.mxu0 0.0
    %1279 = vmatpush1.msra.mxu0 0.0
    %1280 = vmatprep.subr.mxu0 0.0
    %1281 = vmatpush1.msra.mxu0 0.0
    %1282 = vmatprep.subr.mxu0 0.0
    %1283 = vmatpush1.msra.mxu0 0.0
    %1284 = vmatprep.subr.mxu0 0.0
    %1285 = vmatpush1.msra.mxu0 0.0
    %1286 = vmatprep.mubr.f32.mxu0 0.0
    %1287 = vmatmul.mubr.f32.gmra.mrb[0].mxu0 %v1220
    %v1288 = vpop.f32.mrb[0].mxu0
    %v1289 = vadd.f32 0.0, %v1288
    %v1290 = vpop.f32.mrb[0].mxu0
    %1291 = vdwg.mxu0
    %v1292 = vsel %vm453, %v568, 0
    %1294 = vmatprep.subr.mxu0 0.0
    %1295 = vmatpush1.msra.mxu0 %v42
    %1296 = vmatprep.subr.mxu0 0.0
    %1297 = vmatpush1.msra.mxu0 0.0
    %1298 = vmatprep.subr.mxu0 0.0
    %1299 = vmatpush1.msra.mxu0 0.0
    %1300 = vmatprep.subr.mxu0 0.0
    %1301 = vmatpush1.msra.mxu0 0.0
    %1302 = vmatprep.subr.mxu0 0.0
    %1303 = vmatpush1.msra.mxu0 0.0
    %1304 = vmatprep.subr.mxu0 0.0
    %1305 = vmatpush1.msra.mxu0 0.0
    %1306 = vmatprep.subr.mxu0 0.0
    %1307 = vmatpush1.msra.mxu0 0.0
    %1308 = vmatprep.subr.mxu0 0.0
    %1309 = vmatpush1.msra.mxu0 0.0
    %1310 = vmatprep.subr.mxu0 0.0
    %1311 = vmatpush1.msra.mxu0 0.0
    %1312 = vmatprep.subr.mxu0 0.0
    %1313 = vmatpush1.msra.mxu0 0.0
    %1314 = vmatprep.subr.mxu0 0.0
    %1315 = vmatpush1.msra.mxu0 0.0
    %1316 = vmatprep.subr.mxu0 0.0
    %1317 = vmatpush1.msra.mxu0 0.0
    %1318 = vmatprep.subr.mxu0 0.0
    %1319 = vmatpush1.msra.mxu0 0.0
    %1320 = vmatprep.subr.mxu0 0.0
    %1321 = vmatpush1.msra.mxu0 0.0
    %1322 = vmatprep.subr.mxu0 0.0
    %1323 = vmatpush1.msra.mxu0 0.0
    %1324 = vmatprep.subr.mxu0 0.0
    %1325 = vmatpush1.msra.mxu0 0.0
    %1326 = vmatprep.subr.mxu0 0.0
    %1327 = vmatpush1.msra.mxu0 0.0
    %1328 = vmatprep.subr.mxu0 0.0
    %1329 = vmatpush1.msra.mxu0 0.0
    %1330 = vmatprep.subr.mxu0 0.0
    %1331 = vmatpush1.msra.mxu0 0.0
    %1332 = vmatprep.subr.mxu0 0.0
    %1333 = vmatpush1.msra.mxu0 0.0
    %1334 = vmatprep.subr.mxu0 0.0
    %1335 = vmatpush1.msra.mxu0 0.0
    %1336 = vmatprep.subr.mxu0 0.0
    %1337 = vmatpush1.msra.mxu0 0.0
    %1338 = vmatprep.subr.mxu0 0.0
    %1339 = vmatpush1.msra.mxu0 0.0
    %1340 = vmatprep.subr.mxu0 0.0
    %1341 = vmatpush1.msra.mxu0 0.0
    %1342 = vmatprep.subr.mxu0 0.0
    %1343 = vmatpush1.msra.mxu0 0.0
    %1344 = vmatprep.subr.mxu0 0.0
    %1345 = vmatpush1.msra.mxu0 0.0
    %1346 = vmatprep.subr.mxu0 0.0
    %1347 = vmatpush1.msra.mxu0 0.0
    %1348 = vmatprep.subr.mxu0 0.0
    %1349 = vmatpush1.msra.mxu0 0.0
    %1350 = vmatprep.subr.mxu0 0.0
    %1351 = vmatpush1.msra.mxu0 0.0
    %1352 = vmatprep.subr.mxu0 0.0
    %1353 = vmatpush1.msra.mxu0 0.0
    %1354 = vmatprep.subr.mxu0 0.0
    %1355 = vmatpush1.msra.mxu0 0.0
    %1356 = vmatprep.subr.mxu0 0.0
    %1357 = vmatpush1.msra.mxu0 0.0
    %1358 = vmatprep.mubr.f32.mxu0 0.0
    %1359 = vmatmul.mubr.f32.gmra.mrb[0].mxu0 %v1292
    %v1360 = vpop.f32.mrb[0].mxu0
    %v1361 = vadd.f32 0.0, %v1360
    %v1362 = vpop.f32.mrb[0].mxu0
    %1363 = vdwg.mxu0
    %v1364 = vsel %vm453, %v570, 0
    %1366 = vmatprep.subr.mxu0 0.0
    %1367 = vmatpush1.msra.mxu0 %v43
    %1368 = vmatprep.subr.mxu0 0.0
    %1369 = vmatpush1.msra.mxu0 0.0
    %1370 = vmatprep.subr.mxu0 0.0
    %1371 = vmatpush1.msra.mxu0 0.0
    %1372 = vmatprep.subr.mxu0 0.0
    %1373 = vmatpush1.msra.mxu0 0.0
    %1374 = vmatprep.subr.mxu0 0.0
    %1375 = vmatpush1.msra.mxu0 0.0
    %1376 = vmatprep.subr.mxu0 0.0
    %1377 = vmatpush1.msra.mxu0 0.0
    %1378 = vmatprep.subr.mxu0 0.0
    %1379 = vmatpush1.msra.mxu0 0.0
    %1380 = vmatprep.subr.mxu0 0.0
    %1381 = vmatpush1.msra.mxu0 0.0
    %1382 = vmatprep.subr.mxu0 0.0
    %1383 = vmatpush1.msra.mxu0 0.0
    %1384 = vmatprep.subr.mxu0 0.0
    %1385 = vmatpush1.msra.mxu0 0.0
    %1386 = vmatprep.subr.mxu0 0.0
    %1387 = vmatpush1.msra.mxu0 0.0
    %1388 = vmatprep.subr.mxu0 0.0
    %1389 = vmatpush1.msra.mxu0 0.0
    %1390 = vmatprep.subr.mxu0 0.0
    %1391 = vmatpush1.msra.mxu0 0.0
    %1392 = vmatprep.subr.mxu0 0.0
    %1393 = vmatpush1.msra.mxu0 0.0
    %1394 = vmatprep.subr.mxu0 0.0
    %1395 = vmatpush1.msra.mxu0 0.0
    %1396 = vmatprep.subr.mxu0 0.0
    %1397 = vmatpush1.msra.mxu0 0.0
    %1398 = vmatprep.subr.mxu0 0.0
    %1399 = vmatpush1.msra.mxu0 0.0
    %1400 = vmatprep.subr.mxu0 0.0
    %1401 = vmatpush1.msra.mxu0 0.0
    %1402 = vmatprep.subr.mxu0 0.0
    %1403 = vmatpush1.msra.mxu0 0.0
    %1404 = vmatprep.subr.mxu0 0.0
    %1405 = vmatpush1.msra.mxu0 0.0
    %1406 = vmatprep.subr.mxu0 0.0
    %1407 = vmatpush1.msra.mxu0 0.0
    %1408 = vmatprep.subr.mxu0 0.0
    %1409 = vmatpush1.msra.mxu0 0.0
    %1410 = vmatprep.subr.mxu0 0.0
    %1411 = vmatpush1.msra.mxu0 0.0
    %1412 = vmatprep.subr.mxu0 0.0
    %1413 = vmatpush1.msra.mxu0 0.0
    %1414 = vmatprep.subr.mxu0 0.0
    %1415 = vmatpush1.msra.mxu0 0.0
    %1416 = vmatprep.subr.mxu0 0.0
    %1417 = vmatpush1.msra.mxu0 0.0
    %1418 = vmatprep.subr.mxu0 0.0
    %1419 = vmatpush1.msra.mxu0 0.0
    %1420 = vmatprep.subr.mxu0 0.0
    %1421 = vmatpush1.msra.mxu0 0.0
    %1422 = vmatprep.subr.mxu0 0.0
    %1423 = vmatpush1.msra.mxu0 0.0
    %1424 = vmatprep.subr.mxu0 0.0
    %1425 = vmatpush1.msra.mxu0 0.0
    %1426 = vmatprep.subr.mxu0 0.0
    %1427 = vmatpush1.msra.mxu0 0.0
    %1428 = vmatprep.subr.mxu0 0.0
    %1429 = vmatpush1.msra.mxu0 0.0
    %1430 = vmatprep.mubr.f32.mxu0 0.0
    %1431 = vmatmul.mubr.f32.gmra.mrb[0].mxu0 %v1364
    %v1432 = vpop.f32.mrb[0].mxu0
    %v1433 = vadd.f32 0.0, %v1432
    %v1434 = vpop.f32.mrb[0].mxu0
    %1435 = vdwg.mxu0
    %v1436 = vsel %vm453, %v553, 0
    %1438 = vmatprep.subr.mxu0 0.0
    %1439 = vmatpush1.msra.mxu0 %v44
    %1440 = vmatprep.subr.mxu0 0.0
    %1441 = vmatpush1.msra.mxu0 0.0
    %1442 = vmatprep.subr.mxu0 0.0
    %1443 = vmatpush1.msra.mxu0 0.0
    %1444 = vmatprep.subr.mxu0 0.0
    %1445 = vmatpush1.msra.mxu0 0.0
    %1446 = vmatprep.subr.mxu0 0.0
    %1447 = vmatpush1.msra.mxu0 0.0
    %1448 = vmatprep.subr.mxu0 0.0
    %1449 = vmatpush1.msra.mxu0 0.0
    %1450 = vmatprep.subr.mxu0 0.0
    %1451 = vmatpush1.msra.mxu0 0.0
    %1452 = vmatprep.subr.mxu0 0.0
    %1453 = vmatpush1.msra.mxu0 0.0
    %1454 = vmatprep.subr.mxu0 0.0
    %1455 = vmatpush1.msra.mxu0 0.0
    %1456 = vmatprep.subr.mxu0 0.0
    %1457 = vmatpush1.msra.mxu0 0.0
    %1458 = vmatprep.subr.mxu0 0.0
    %1459 = vmatpush1.msra.mxu0 0.0
    %1460 = vmatprep.subr.mxu0 0.0
    %1461 = vmatpush1.msra.mxu0 0.0
    %1462 = vmatprep.subr.mxu0 0.0
    %1463 = vmatpush1.msra.mxu0 0.0
    %1464 = vmatprep.subr.mxu0 0.0
    %1465 = vmatpush1.msra.mxu0 0.0
    %1466 = vmatprep.subr.mxu0 0.0
    %1467 = vmatpush1.msra.mxu0 0.0
    %1468 = vmatprep.subr.mxu0 0.0
    %1469 = vmatpush1.msra.mxu0 0.0
    %1470 = vmatprep.subr.mxu0 0.0
    %1471 = vmatpush1.msra.mxu0 0.0
    %1472 = vmatprep.subr.mxu0 0.0
    %1473 = vmatpush1.msra.mxu0 0.0
    %1474 = vmatprep.subr.mxu0 0.0
    %1475 = vmatpush1.msra.mxu0 0.0
    %1476 = vmatprep.subr.mxu0 0.0
    %1477 = vmatpush1.msra.mxu0 0.0
    %1478 = vmatprep.subr.mxu0 0.0
    %1479 = vmatpush1.msra.mxu0 0.0
    %1480 = vmatprep.subr.mxu0 0.0
    %1481 = vmatpush1.msra.mxu0 0.0
    %1482 = vmatprep.subr.mxu0 0.0
    %1483 = vmatpush1.msra.mxu0 0.0
    %1484 = vmatprep.subr.mxu0 0.0
    %1485 = vmatpush1.msra.mxu0 0.0
    %1486 = vmatprep.subr.mxu0 0.0
    %1487 = vmatpush1.msra.mxu0 0.0
    %1488 = vmatprep.subr.mxu0 0.0
    %1489 = vmatpush1.msra.mxu0 0.0
    %1490 = vmatprep.subr.mxu0 0.0
    %1491 = vmatpush1.msra.mxu0 0.0
    %1492 = vmatprep.subr.mxu0 0.0
    %1493 = vmatpush1.msra.mxu0 0.0
    %1494 = vmatprep.subr.mxu0 0.0
    %1495 = vmatpush1.msra.mxu0 0.0
    %1496 = vmatprep.subr.mxu0 0.0
    %1497 = vmatpush1.msra.mxu0 0.0
    %1498 = vmatprep.subr.mxu0 0.0
    %1499 = vmatpush1.msra.mxu0 0.0
    %1500 = vmatprep.subr.mxu0 0.0
    %1501 = vmatpush1.msra.mxu0 0.0
    %1502 = vmatprep.mubr.f32.mxu0 0.0
    %1503 = vmatmul.mubr.f32.gmra.mrb[0].mxu0 %v1436
    %v1504 = vpop.f32.mrb[0].mxu0
    %v1505 = vadd.f32 0.0, %v1504
    %v1506 = vpop.f32.mrb[0].mxu0
    %1507 = vdwg.mxu0
    %v1508 = vsel %vm453, %v567, 0
    %1510 = vmatprep.subr.mxu0 0.0
    %1511 = vmatpush1.msra.mxu0 %v45
    %1512 = vmatprep.subr.mxu0 0.0
    %1513 = vmatpush1.msra.mxu0 0.0
    %1514 = vmatprep.subr.mxu0 0.0
    %1515 = vmatpush1.msra.mxu0 0.0
    %1516 = vmatprep.subr.mxu0 0.0
    %1517 = vmatpush1.msra.mxu0 0.0
    %1518 = vmatprep.subr.mxu0 0.0
    %1519 = vmatpush1.msra.mxu0 0.0
    %1520 = vmatprep.subr.mxu0 0.0
    %1521 = vmatpush1.msra.mxu0 0.0
    %1522 = vmatprep.subr.mxu0 0.0
    %1523 = vmatpush1.msra.mxu0 0.0
    %1524 = vmatprep.subr.mxu0 0.0
    %1525 = vmatpush1.msra.mxu0 0.0
    %1526 = vmatprep.subr.mxu0 0.0
    %1527 = vmatpush1.msra.mxu0 0.0
    %1528 = vmatprep.subr.mxu0 0.0
    %1529 = vmatpush1.msra.mxu0 0.0
    %1530 = vmatprep.subr.mxu0 0.0
    %1531 = vmatpush1.msra.mxu0 0.0
    %1532 = vmatprep.subr.mxu0 0.0
    %1533 = vmatpush1.msra.mxu0 0.0
    %1534 = vmatprep.subr.mxu0 0.0
    %1535 = vmatpush1.msra.mxu0 0.0
    %1536 = vmatprep.subr.mxu0 0.0
    %1537 = vmatpush1.msra.mxu0 0.0
    %1538 = vmatprep.subr.mxu0 0.0
    %1539 = vmatpush1.msra.mxu0 0.0
    %1540 = vmatprep.subr.mxu0 0.0
    %1541 = vmatpush1.msra.mxu0 0.0
    %1542 = vmatprep.subr.mxu0 0.0
    %1543 = vmatpush1.msra.mxu0 0.0
    %1544 = vmatprep.subr.mxu0 0.0
    %1545 = vmatpush1.msra.mxu0 0.0
    %1546 = vmatprep.subr.mxu0 0.0
    %1547 = vmatpush1.msra.mxu0 0.0
    %1548 = vmatprep.subr.mxu0 0.0
    %1549 = vmatpush1.msra.mxu0 0.0
    %1550 = vmatprep.subr.mxu0 0.0
    %1551 = vmatpush1.msra.mxu0 0.0
    %1552 = vmatprep.subr.mxu0 0.0
    %1553 = vmatpush1.msra.mxu0 0.0
    %1554 = vmatprep.subr.mxu0 0.0
    %1555 = vmatpush1.msra.mxu0 0.0
    %1556 = vmatprep.subr.mxu0 0.0
    %1557 = vmatpush1.msra.mxu0 0.0
    %1558 = vmatprep.subr.mxu0 0.0
    %1559 = vmatpush1.msra.mxu0 0.0
    %1560 = vmatprep.subr.mxu0 0.0
    %1561 = vmatpush1.msra.mxu0 0.0
    %1562 = vmatprep.subr.mxu0 0.0
    %1563 = vmatpush1.msra.mxu0 0.0
    %1564 = vmatprep.subr.mxu0 0.0
    %1565 = vmatpush1.msra.mxu0 0.0
    %1566 = vmatprep.subr.mxu0 0.0
    %1567 = vmatpush1.msra.mxu0 0.0
    %1568 = vmatprep.subr.mxu0 0.0
    %1569 = vmatpush1.msra.mxu0 0.0
    %1570 = vmatprep.subr.mxu0 0.0
    %1571 = vmatpush1.msra.mxu0 0.0
    %1572 = vmatprep.subr.mxu0 0.0
    %1573 = vmatpush1.msra.mxu0 0.0
    %1574 = vmatprep.mubr.f32.mxu0 0.0
    %1575 = vmatmul.mubr.f32.gmra.mrb[0].mxu0 %v1508
    %v1576 = vpop.f32.mrb[0].mxu0
    %v1577 = vadd.f32 0.0, %v1576
    %v1578 = vpop.f32.mrb[0].mxu0
    %1579 = vdwg.mxu0
    %v1580 = vsel %vm453, %v569, 0
    %1582 = vmatprep.subr.mxu0 0.0
    %1583 = vmatpush1.msra.mxu0 %v46
    %1584 = vmatprep.subr.mxu0 0.0
    %1585 = vmatpush1.msra.mxu0 0.0
    %1586 = vmatprep.subr.mxu0 0.0
    %1587 = vmatpush1.msra.mxu0 0.0
    %1588 = vmatprep.subr.mxu0 0.0
    %1589 = vmatpush1.msra.mxu0 0.0
    %1590 = vmatprep.subr.mxu0 0.0
    %1591 = vmatpush1.msra.mxu0 0.0
    %1592 = vmatprep.subr.mxu0 0.0
    %1593 = vmatpush1.msra.mxu0 0.0
    %1594 = vmatprep.subr.mxu0 0.0
    %1595 = vmatpush1.msra.mxu0 0.0
    %1596 = vmatprep.subr.mxu0 0.0
    %1597 = vmatpush1.msra.mxu0 0.0
    %1598 = vmatprep.subr.mxu0 0.0
    %1599 = vmatpush1.msra.mxu0 0.0
    %1600 = vmatprep.subr.mxu0 0.0
    %1601 = vmatpush1.msra.mxu0 0.0
    %1602 = vmatprep.subr.mxu0 0.0
    %1603 = vmatpush1.msra.mxu0 0.0
    %1604 = vmatprep.subr.mxu0 0.0
    %1605 = vmatpush1.msra.mxu0 0.0
    %1606 = vmatprep.subr.mxu0 0.0
    %1607 = vmatpush1.msra.mxu0 0.0
    %1608 = vmatprep.subr.mxu0 0.0
    %1609 = vmatpush1.msra.mxu0 0.0
    %1610 = vmatprep.subr.mxu0 0.0
    %1611 = vmatpush1.msra.mxu0 0.0
    %1612 = vmatprep.subr.mxu0 0.0
    %1613 = vmatpush1.msra.mxu0 0.0
    %1614 = vmatprep.subr.mxu0 0.0
    %1615 = vmatpush1.msra.mxu0 0.0
    %1616 = vmatprep.subr.mxu0 0.0
    %1617 = vmatpush1.msra.mxu0 0.0
    %1618 = vmatprep.subr.mxu0 0.0
    %1619 = vmatpush1.msra.mxu0 0.0
    %1620 = vmatprep.subr.mxu0 0.0
    %1621 = vmatpush1.msra.mxu0 0.0
    %1622 = vmatprep.subr.mxu0 0.0
    %1623 = vmatpush1.msra.mxu0 0.0
    %1624 = vmatprep.subr.mxu0 0.0
    %1625 = vmatpush1.msra.mxu0 0.0
    %1626 = vmatprep.subr.mxu0 0.0
    %1627 = vmatpush1.msra.mxu0 0.0
    %1628 = vmatprep.subr.mxu0 0.0
    %1629 = vmatpush1.msra.mxu0 0.0
    %1630 = vmatprep.subr.mxu0 0.0
    %1631 = vmatpush1.msra.mxu0 0.0
    %1632 = vmatprep.subr.mxu0 0.0
    %1633 = vmatpush1.msra.mxu0 0.0
    %1634 = vmatprep.subr.mxu0 0.0
    %1635 = vmatpush1.msra.mxu0 0.0
    %1636 = vmatprep.subr.mxu0 0.0
    %1637 = vmatpush1.msra.mxu0 0.0
    %1638 = vmatprep.subr.mxu0 0.0
    %1639 = vmatpush1.msra.mxu0 0.0
    %1640 = vmatprep.subr.mxu0 0.0
    %1641 = vmatpush1.msra.mxu0 0.0
    %1642 = vmatprep.subr.mxu0 0.0
    %1643 = vmatpush1.msra.mxu0 0.0
    %1644 = vmatprep.subr.mxu0 0.0
    %1645 = vmatpush1.msra.mxu0 0.0
    %1646 = vmatprep.mubr.f32.mxu0 0.0
    %1647 = vmatmul.mubr.f32.gmra.mrb[0].mxu0 %v1580
    %v1648 = vpop.f32.mrb[0].mxu0
    %v1649 = vadd.f32 0.0, %v1648
    %v1650 = vpop.f32.mrb[0].mxu0
    %1651 = vdwg.mxu0
    %v1652 = vsel %vm453, %v571, 0
    %1654 = vmatprep.subr.mxu0 0.0
    %1655 = vmatpush1.msra.mxu0 %v47
    %1656 = vmatprep.subr.mxu0 0.0
    %1657 = vmatpush1.msra.mxu0 0.0
    %1658 = vmatprep.subr.mxu0 0.0
    %1659 = vmatpush1.msra.mxu0 0.0
    %1660 = vmatprep.subr.mxu0 0.0
    %1661 = vmatpush1.msra.mxu0 0.0
    %1662 = vmatprep.subr.mxu0 0.0
    %1663 = vmatpush1.msra.mxu0 0.0
    %1664 = vmatprep.subr.mxu0 0.0
    %1665 = vmatpush1.msra.mxu0 0.0
    %1666 = vmatprep.subr.mxu0 0.0
    %1667 = vmatpush1.msra.mxu0 0.0
    %1668 = vmatprep.subr.mxu0 0.0
    %1669 = vmatpush1.msra.mxu0 0.0
    %1670 = vmatprep.subr.mxu0 0.0
    %1671 = vmatpush1.msra.mxu0 0.0
    %1672 = vmatprep.subr.mxu0 0.0
    %1673 = vmatpush1.msra.mxu0 0.0
    %1674 = vmatprep.subr.mxu0 0.0
    %1675 = vmatpush1.msra.mxu0 0.0
    %1676 = vmatprep.subr.mxu0 0.0
    %1677 = vmatpush1.msra.mxu0 0.0
    %1678 = vmatprep.subr.mxu0 0.0
    %1679 = vmatpush1.msra.mxu0 0.0
    %1680 = vmatprep.subr.mxu0 0.0
    %1681 = vmatpush1.msra.mxu0 0.0
    %1682 = vmatprep.subr.mxu0 0.0
    %1683 = vmatpush1.msra.mxu0 0.0
    %1684 = vmatprep.subr.mxu0 0.0
    %1685 = vmatpush1.msra.mxu0 0.0
    %1686 = vmatprep.subr.mxu0 0.0
    %1687 = vmatpush1.msra.mxu0 0.0
    %1688 = vmatprep.subr.mxu0 0.0
    %1689 = vmatpush1.msra.mxu0 0.0
    %1690 = vmatprep.subr.mxu0 0.0
    %1691 = vmatpush1.msra.mxu0 0.0
    %1692 = vmatprep.subr.mxu0 0.0
    %1693 = vmatpush1.msra.mxu0 0.0
    %1694 = vmatprep.subr.mxu0 0.0
    %1695 = vmatpush1.msra.mxu0 0.0
    %1696 = vmatprep.subr.mxu0 0.0
    %1697 = vmatpush1.msra.mxu0 0.0
    %1698 = vmatprep.subr.mxu0 0.0
    %1699 = vmatpush1.msra.mxu0 0.0
    %1700 = vmatprep.subr.mxu0 0.0
    %1701 = vmatpush1.msra.mxu0 0.0
    %1702 = vmatprep.subr.mxu0 0.0
    %1703 = vmatpush1.msra.mxu0 0.0
    %1704 = vmatprep.subr.mxu0 0.0
    %1705 = vmatpush1.msra.mxu0 0.0
    %1706 = vmatprep.subr.mxu0 0.0
    %1707 = vmatpush1.msra.mxu0 0.0
    %1708 = vmatprep.subr.mxu0 0.0
    %1709 = vmatpush1.msra.mxu0 0.0
    %1710 = vmatprep.subr.mxu0 0.0
    %1711 = vmatpush1.msra.mxu0 0.0
    %1712 = vmatprep.subr.mxu0 0.0
    %1713 = vmatpush1.msra.mxu0 0.0
    %1714 = vmatprep.subr.mxu0 0.0
    %1715 = vmatpush1.msra.mxu0 0.0
    %1716 = vmatprep.subr.mxu0 0.0
    %1717 = vmatpush1.msra.mxu0 0.0
    %1718 = vmatprep.mubr.f32.mxu0 0.0
    %1719 = vmatmul.mubr.f32.gmra.mrb[0].mxu0 %v1652
    %v1720 = vpop.f32.mrb[0].mxu0
    %v1721 = vadd.f32 0.0, %v1720
    %v1722 = vpop.f32.mrb[0].mxu0
    %1723 = vdwg.mxu0
    %v1724 = vrcp.pop %v468
    %v1725 = vmul.f32 1.0, %v1724
    %v1726 = vrcp.pop %v471
    %v1727 = vmul.f32 1.0, %v1726
    %v1730 = vrot.slane %v1725, 1
    %v1731 = vrot.slane %v1725, 2
    %v1732 = vrot.slane %v1725, 3
    %v1733 = vrot.slane %v1725, 4
    %v1734 = vrot.slane %v1725, 5
    %v1735 = vrot.slane %v1725, 6
    %v1736 = vrot.slane %v1725, 7
    %v1737 = vrot.slane %v1727, 1
    %v1738 = vrot.slane %v1727, 2
    %v1739 = vrot.slane %v1727, 3
    %v1740 = vrot.slane %v1727, 4
    %v1741 = vrot.slane %v1727, 5
    %v1742 = vrot.slane %v1727, 6
    %v1743 = vrot.slane %v1727, 7
    %v1760 = vmul.f32 %v641, %v1725
    %v1761 = vmul.f32 %v713, %v1730
    %v1762 = vmul.f32 %v785, %v1731
    %v1763 = vmul.f32 %v857, %v1732
    %v1764 = vmul.f32 %v929, %v1733
    %v1765 = vmul.f32 %v1001, %v1734
    %v1766 = vmul.f32 %v1073, %v1735
    %v1767 = vmul.f32 %v1145, %v1736
    %v1768 = vmul.f32 %v1217, %v1727
    %v1769 = vmul.f32 %v1289, %v1737
    %v1770 = vmul.f32 %v1361, %v1738
    %v1771 = vmul.f32 %v1433, %v1739
    %v1772 = vmul.f32 %v1505, %v1740
    %v1773 = vmul.f32 %v1577, %v1741
    %v1774 = vmul.f32 %v1649, %v1742
    %v1775 = vmul.f32 %v1721, %v1743
    %v1792 = vrot.slane %v1761, 7
    %v1793 = vsel %vm428, %v1792, %v1760
    %v1794 = vrot.slane %v1762, 6
    %v1795 = vsel %vm430, %v1794, %v1793
    %v1796 = vrot.slane %v1763, 5
    %v1797 = vsel %vm432, %v1796, %v1795
    %v1798 = vrot.slane %v1764, 4
    %v1799 = vsel %vm434, %v1798, %v1797
    %v1800 = vrot.slane %v1765, 3
    %v1801 = vsel %vm436, %v1800, %v1799
    %v1802 = vrot.slane %v1766, 2
    %v1803 = vsel %vm438, %v1802, %v1801
    %v1804 = vrot.slane %v1767, 1
    %v1805 = vsel %vm440, %v1804, %v1803
    %v1806 = vrot.slane %v1769, 7
    %v1807 = vsel %vm428, %v1806, %v1768
    %v1808 = vrot.slane %v1770, 6
    %v1809 = vsel %vm430, %v1808, %v1807
    %v1810 = vrot.slane %v1771, 5
    %v1811 = vsel %vm432, %v1810, %v1809
    %v1812 = vrot.slane %v1772, 4
    %v1813 = vsel %vm434, %v1812, %v1811
    %v1814 = vrot.slane %v1773, 3
    %v1815 = vsel %vm436, %v1814, %v1813
    %v1816 = vrot.slane %v1774, 2
    %v1817 = vsel %vm438, %v1816, %v1815
    %v1818 = vrot.slane %v1775, 1
    %v1819 = vsel %vm440, %v1818, %v1817
    %1822 = vst.msk [vmem:[#allocation5] sm:$0xff] %vm52, %v1805
    %1823 = vst.msk [vmem:[#allocation5 + $0x8] sm:$0xff] %vm52, %v1819
    // Predicated region
    $region22: #{tpu_custom_call.1} parent=1 // pred_check
      _
    $region23: #{tpu_custom_call.1} parent=1 // pred_check_branch
      %1825 = sbr.rel (0) target = $region25
    $region24: #{tpu_custom_call.1} parent=1 // pred_region
      %s1827 = ssub.s32 256, 256
      %1828 = vsyncadd [#allocation4], %s1827
      %s1829 = sshll.u32 [#allocation5], 4
      %s1830 = int_to_ptr.vmem [resolvable:$true] %s1829
      %1835 = dma.vmem_to_hbm [thread:$0]  %s1830, 256, %s4, [#allocation4], 128, 128, 8
    $region25: #{tpu_custom_call.1} parent=1 // pred_fallthru
      _
    // Predicated region
    $region26: #{tpu_custom_call.1} parent=1 // pred_check
      _
    $region27: #{tpu_custom_call.1} parent=1 // pred_check_branch
      %1837 = sbr.rel (0) target = $region29
    $region28: #{tpu_custom_call.1} parent=1 // pred_region
      %1838 = dma.done [#allocation4], 256
    $region29: #{tpu_custom_call.1} parent=1 // pred_fallthru
      _
    %1839 = vsyncpa [#allocation3], 1
    %1840 = vsyncpa [#allocation4], 1

</llo_original>
